<compile_context>
chip_gen: v5e
topology: v5e:2x2
jax: 0.10.0
libtpu: 0.0.40
codegen_flags: <defaults>
</compile_context>

<pallas_src>
import math

import jax
import jax.numpy as jnp
from jax import lax
from jax.experimental import pallas as pl
from jax.experimental.pallas import tpu as pltpu

NUM_HEADS = 4
DIM_MODEL = 32
D_K = DIM_MODEL // NUM_HEADS


def _dot_wt(x, w):
    # x @ w.T  (contract x's last dim with w's last dim) -- matches nn.Linear.
    # bf16 operands, f32 accumulation.
    return lax.dot_general(x, w, (((1,), (1,)), ((), ())),
                           preferred_element_type=jnp.float32)


def mha_kernel(q_ref, k_ref, v_ref, mask_ref,
               wq_ref, bq_ref, wk_ref, bk_ref, wv_ref, bv_ref,
               wo_ref, bo_ref, out_ref, ctx_ref):
    TB, S, D = q_ref.shape

    # ---- input projections on the flattened (TB*S, D) slab (bigger MXU M dim) ----
    q = q_ref[...].reshape(TB * S, D).astype(jnp.bfloat16)
    k = k_ref[...].reshape(TB * S, D).astype(jnp.bfloat16)
    v = v_ref[...].reshape(TB * S, D).astype(jnp.bfloat16)

    Q = _dot_wt(q, wq_ref[...]) + bq_ref[...]          # (TB*S, D) f32
    K = _dot_wt(k, wk_ref[...]) + bk_ref[...]
    V = _dot_wt(v, wv_ref[...]) + bv_ref[...]

    Qb = Q.astype(jnp.bfloat16).reshape(TB, S, D)
    Kb = K.astype(jnp.bfloat16).reshape(TB, S, D)
    Vb = V.astype(jnp.bfloat16).reshape(TB, S, D)

    # ---- mask bias hoisted out of the head loop (one compare+select per tile) ----
    mbias = jnp.where(mask_ref[...] == 0.0,
                      jnp.float32(-1000000000.0), jnp.float32(0.0))   # (TB, S, S)

    scale = jnp.float32(1.0 / math.sqrt(D_K))

    # ---- per-head attention; each head's output lands in its lane slice of ctx ----
    for h in range(NUM_HEADS):                       # static unroll over heads
        sl = slice(h * D_K, (h + 1) * D_K)
        qh = Qb[:, :, sl]                            # (TB, S, dk) bf16
        kh = Kb[:, :, sl]
        vh = Vb[:, :, sl]

        # scores = qh @ kh.T / sqrt(dk) + mask_bias   (f32 accumulation)
        s = jnp.einsum('bqd,bkd->bqk', qh, kh,
                       preferred_element_type=jnp.float32) * scale + mbias

        # softmax over the key axis (f32), divide on the EUP via approx reciprocal
        s_max = jnp.max(s, axis=-1, keepdims=True)
        e = jnp.exp(s - s_max)
        denom = jnp.sum(e, axis=-1, keepdims=True)
        p = e * pl.reciprocal(denom, approx=True)

        ah = jnp.einsum('bqk,bkd->bqd', p.astype(jnp.bfloat16), vh,
                        preferred_element_type=jnp.float32)           # (TB, S, dk)
        ctx_ref[:, :, sl] = ah                       # write into concat buffer

    # ---- single full-width output projection over the concatenated heads ----
    ctx = ctx_ref[...].astype(jnp.bfloat16).reshape(TB * S, D)
    out = _dot_wt(ctx, wo_ref[...]) + bo_ref[...]    # (TB*S, D) f32
    out_ref[...] = out.reshape(TB, S, D)


def multi_headed_attention(q, k, v, mask, params, tb=None):
    B, S, D = q.shape
    assert D == NUM_HEADS * D_K
    if tb is None:
        # Batch-block, but keep >= 2 grid steps when possible (v7x has 2 TensorCores).
        tb = 1 if B < 2 else B // 2
        while B % tb:
            tb -= 1
    assert B % tb == 0

    wq, bq, wk, bk, wv, bv, wo, bo = params
    # Weights shipped to the kernel in bf16 (MXU operands); biases stay f32.
    wq, wk, wv, wo = (w.astype(jnp.bfloat16) for w in (wq, wk, wv, wo))
    bq, bk, bv, bo = (b.reshape(1, D).astype(jnp.float32) for b in (bq, bk, bv, bo))

    x_spec = pl.BlockSpec((tb, S, D), lambda b: (b, 0, 0))
    m_spec = pl.BlockSpec((tb, S, S), lambda b: (b, 0, 0))
    w_spec = pl.BlockSpec((D, D), lambda b: (0, 0))
    b_spec = pl.BlockSpec((1, D), lambda b: (0, 0))

    return pl.pallas_call(
        mha_kernel,
        out_shape=jax.ShapeDtypeStruct((B, S, D), jnp.float32),
        grid_spec=pltpu.PrefetchScalarGridSpec(
            num_scalar_prefetch=0,
            grid=(B // tb,),
            in_specs=[x_spec, x_spec, x_spec, m_spec,
                      w_spec, b_spec, w_spec, b_spec,
                      w_spec, b_spec, w_spec, b_spec],
            out_specs=x_spec,
            scratch_shapes=[pltpu.VMEM((tb, S, D), jnp.float32)],   # head-concat buffer
        ),
        compiler_params=pltpu.CompilerParams(
            dimension_semantics=("parallel",)),
    )(q, k, v, mask, wq, bq, wk, bk, wv, bv, wo, bo)


def ref_mha(q, k, v, mask, params):
    """Plain-JAX (f32) reference matching the PyTorch forward semantics."""
    wq, bq, wk, bk, wv, bv, wo, bo = params
    B, S, D = q.shape
    Q = q @ wq.T + bq
    K = k @ wk.T + bk
    V = v @ wv.T + bv
    Q = Q.reshape(B, S, NUM_HEADS, D_K).transpose(0, 2, 1, 3)
    K = K.reshape(B, S, NUM_HEADS, D_K).transpose(0, 2, 1, 3)
    V = V.reshape(B, S, NUM_HEADS, D_K).transpose(0, 2, 1, 3)
    scores = jnp.einsum('bhqd,bhkd->bhqk', Q, K) / math.sqrt(D_K)
    scores = jnp.where(mask[:, None, :, :] == 0, -1000000000.0, scores)
    p = jax.nn.softmax(scores, axis=-1)
    ctx = jnp.einsum('bhqk,bhkd->bhqd', p, V)
    ctx = ctx.transpose(0, 2, 1, 3).reshape(B, S, D)
    return ctx @ wo.T + bo


def init_params(key, dim_model):
    """Deterministic nn.Linear-style init: U(-1/sqrt(fan_in), 1/sqrt(fan_in))."""
    bound = 1.0 / math.sqrt(dim_model)
    keys = jax.random.split(key, 8)
    params = []
    for i in range(4):  # Wq, Wk, Wv, Wo
        w = jax.random.uniform(keys[2 * i], (dim_model, dim_model),
                               jnp.float32, -bound, bound)
        b = jax.random.uniform(keys[2 * i + 1], (dim_model,),
                               jnp.float32, -bound, bound)
        params += [w, b]
    return tuple(params)


if __name__ == "__main__":
    B, S, D = 2, 8, DIM_MODEL

    key = jax.random.PRNGKey(0)
    kq, kk, kv, kp = jax.random.split(key, 4)
    q = jax.random.normal(kq, (B, S, D), jnp.float32)
    k = jax.random.normal(kk, (B, S, D), jnp.float32)
    v = jax.random.normal(kv, (B, S, D), jnp.float32)
    # causal mask (1 = keep, 0 = masked) — same for every batch element
    mask = jnp.tril(jnp.ones((S, S), jnp.float32))[None].repeat(B, axis=0)

    params = init_params(kp, D)

    out = multi_headed_attention(q, k, v, mask, params)
    out = jax.block_until_ready(out)

    ref = ref_mha(q, k, v, mask, params)
    assert out.shape == (B, S, D)
    max_err = float(jnp.max(jnp.abs(out - ref)))
    # bf16 MXU operands with f32 accumulation -> relaxed tolerance vs. the f32 reference
    assert jnp.allclose(out, ref, atol=5e-2, rtol=5e-2), max_err

    print("KERNEL_OK")
</pallas_src>

<mosaic_0001>
module attributes {stable_mosaic.version = 11 : i64} {
  func.func @mha_kernel(%arg0: i32, %arg1: memref<1x8x32xf32, #tpu.memory_space<vmem>>, %arg2: memref<1x8x32xf32, #tpu.memory_space<vmem>>, %arg3: memref<1x8x32xf32, #tpu.memory_space<vmem>>, %arg4: memref<1x8x8xf32, #tpu.memory_space<vmem>>, %arg5: memref<32x32xbf16, #tpu.memory_space<vmem>>, %arg6: memref<1x32xf32, #tpu.memory_space<vmem>>, %arg7: memref<32x32xbf16, #tpu.memory_space<vmem>>, %arg8: memref<1x32xf32, #tpu.memory_space<vmem>>, %arg9: memref<32x32xbf16, #tpu.memory_space<vmem>>, %arg10: memref<1x32xf32, #tpu.memory_space<vmem>>, %arg11: memref<32x32xbf16, #tpu.memory_space<vmem>>, %arg12: memref<1x32xf32, #tpu.memory_space<vmem>>, %arg13: memref<1x8x32xf32, #tpu.memory_space<vmem>>, %arg14: memref<1x8x32xf32, #tpu.memory_space<vmem>>) attributes {dimension_semantics = [#tpu.dimension_semantics<parallel>], iteration_bounds = array<i64: 2>, scalar_prefetch = 0 : i64, scratch_operands = 1 : i64, tpu.core_type = #tpu.core_type<tc>, window_params = [{transform_indices = @transform_0, window_bounds = array<i64: 1, 8, 32>}, {transform_indices = @transform_1, window_bounds = array<i64: 1, 8, 32>}, {transform_indices = @transform_2, window_bounds = array<i64: 1, 8, 32>}, {transform_indices = @transform_3, window_bounds = array<i64: 1, 8, 8>}, {pipeline_mode = #tpu.pipeline_mode<synchronous>, transform_indices = @transform_4, window_bounds = array<i64: 32, 32>}, {pipeline_mode = #tpu.pipeline_mode<synchronous>, transform_indices = @transform_5, window_bounds = array<i64: 1, 32>}, {pipeline_mode = #tpu.pipeline_mode<synchronous>, transform_indices = @transform_6, window_bounds = array<i64: 32, 32>}, {pipeline_mode = #tpu.pipeline_mode<synchronous>, transform_indices = @transform_7, window_bounds = array<i64: 1, 32>}, {pipeline_mode = #tpu.pipeline_mode<synchronous>, transform_indices = @transform_8, window_bounds = array<i64: 32, 32>}, {pipeline_mode = #tpu.pipeline_mode<synchronous>, transform_indices = @transform_9, window_bounds = array<i64: 1, 32>}, {pipeline_mode = #tpu.pipeline_mode<synchronous>, transform_indices = @transform_10, window_bounds = array<i64: 32, 32>}, {pipeline_mode = #tpu.pipeline_mode<synchronous>, transform_indices = @transform_11, window_bounds = array<i64: 1, 32>}, {transform_indices = @transform_12, window_bounds = array<i64: 1, 8, 32>}]} {
    %c0 = arith.constant 0 : index
    %c0_0 = arith.constant 0 : index
    %c0_1 = arith.constant 0 : index
    %0 = vector.load %arg1[%c0, %c0_0, %c0_1] : memref<1x8x32xf32, #tpu.memory_space<vmem>>, vector<1x8x32xf32>
    %1 = vector.shape_cast %0 : vector<1x8x32xf32> to vector<8x32xf32>
    %2 = arith.truncf %1 : vector<8x32xf32> to vector<8x32xbf16>
    %c0_2 = arith.constant 0 : index
    %c0_3 = arith.constant 0 : index
    %c0_4 = arith.constant 0 : index
    %3 = vector.load %arg2[%c0_2, %c0_3, %c0_4] : memref<1x8x32xf32, #tpu.memory_space<vmem>>, vector<1x8x32xf32>
    %4 = vector.shape_cast %3 : vector<1x8x32xf32> to vector<8x32xf32>
    %5 = arith.truncf %4 : vector<8x32xf32> to vector<8x32xbf16>
    %c0_5 = arith.constant 0 : index
    %c0_6 = arith.constant 0 : index
    %c0_7 = arith.constant 0 : index
    %6 = vector.load %arg3[%c0_5, %c0_6, %c0_7] : memref<1x8x32xf32, #tpu.memory_space<vmem>>, vector<1x8x32xf32>
    %7 = vector.shape_cast %6 : vector<1x8x32xf32> to vector<8x32xf32>
    %8 = arith.truncf %7 : vector<8x32xf32> to vector<8x32xbf16>
    %c0_8 = arith.constant 0 : index
    %c0_9 = arith.constant 0 : index
    %9 = vector.load %arg5[%c0_8, %c0_9] : memref<32x32xbf16, #tpu.memory_space<vmem>>, vector<32x32xbf16>
    %cst = arith.constant dense<0.000000e+00> : vector<8x32xf32>
    %10 = tpu.matmul %2, %9, %cst {dimension_numbers = #tpu.dot_dimension_numbers<[1], [1], [0], [0], [0, 0, 1, 0], [], []>} : vector<8x32xbf16>, vector<32x32xbf16>, vector<8x32xf32> -> vector<8x32xf32>
    %c0_10 = arith.constant 0 : index
    %c0_11 = arith.constant 0 : index
    %11 = vector.load %arg6[%c0_10, %c0_11] : memref<1x32xf32, #tpu.memory_space<vmem>>, vector<1x32xf32>
    %12 = vector.broadcast %11 : vector<1x32xf32> to vector<8x32xf32>
    %13 = arith.addf %10, %12 : vector<8x32xf32>
    %c0_12 = arith.constant 0 : index
    %c0_13 = arith.constant 0 : index
    %14 = vector.load %arg7[%c0_12, %c0_13] : memref<32x32xbf16, #tpu.memory_space<vmem>>, vector<32x32xbf16>
    %cst_14 = arith.constant dense<0.000000e+00> : vector<8x32xf32>
    %15 = tpu.matmul %5, %14, %cst_14 {dimension_numbers = #tpu.dot_dimension_numbers<[1], [1], [0], [0], [0, 0, 1, 0], [], []>} : vector<8x32xbf16>, vector<32x32xbf16>, vector<8x32xf32> -> vector<8x32xf32>
    %c0_15 = arith.constant 0 : index
    %c0_16 = arith.constant 0 : index
    %16 = vector.load %arg8[%c0_15, %c0_16] : memref<1x32xf32, #tpu.memory_space<vmem>>, vector<1x32xf32>
    %17 = vector.broadcast %16 : vector<1x32xf32> to vector<8x32xf32>
    %18 = arith.addf %15, %17 : vector<8x32xf32>
    %c0_17 = arith.constant 0 : index
    %c0_18 = arith.constant 0 : index
    %19 = vector.load %arg9[%c0_17, %c0_18] : memref<32x32xbf16, #tpu.memory_space<vmem>>, vector<32x32xbf16>
    %cst_19 = arith.constant dense<0.000000e+00> : vector<8x32xf32>
    %20 = tpu.matmul %8, %19, %cst_19 {dimension_numbers = #tpu.dot_dimension_numbers<[1], [1], [0], [0], [0, 0, 1, 0], [], []>} : vector<8x32xbf16>, vector<32x32xbf16>, vector<8x32xf32> -> vector<8x32xf32>
    %c0_20 = arith.constant 0 : index
    %c0_21 = arith.constant 0 : index
    %21 = vector.load %arg10[%c0_20, %c0_21] : memref<1x32xf32, #tpu.memory_space<vmem>>, vector<1x32xf32>
    %22 = vector.broadcast %21 : vector<1x32xf32> to vector<8x32xf32>
    %23 = arith.addf %20, %22 : vector<8x32xf32>
    %24 = arith.truncf %13 : vector<8x32xf32> to vector<8x32xbf16>
    %25 = vector.shape_cast %24 : vector<8x32xbf16> to vector<1x8x32xbf16>
    %26 = arith.truncf %18 : vector<8x32xf32> to vector<8x32xbf16>
    %27 = vector.shape_cast %26 : vector<8x32xbf16> to vector<1x8x32xbf16>
    %28 = arith.truncf %23 : vector<8x32xf32> to vector<8x32xbf16>
    %29 = vector.shape_cast %28 : vector<8x32xbf16> to vector<1x8x32xbf16>
    %c0_22 = arith.constant 0 : index
    %c0_23 = arith.constant 0 : index
    %c0_24 = arith.constant 0 : index
    %30 = vector.load %arg4[%c0_22, %c0_23, %c0_24] : memref<1x8x8xf32, #tpu.memory_space<vmem>>, vector<1x8x8xf32>
    %cst_25 = arith.constant 0.000000e+00 : f32
    %31 = vector.broadcast %cst_25 : f32 to vector<1x8x8xf32>
    %32 = arith.cmpf oeq, %30, %31 : vector<1x8x8xf32>
    %cst_26 = arith.constant -1.000000e+09 : f32
    %cst_27 = arith.constant 0.000000e+00 : f32
    %33 = vector.broadcast %cst_26 : f32 to vector<1x8x8xf32>
    %34 = vector.broadcast %cst_27 : f32 to vector<1x8x8xf32>
    %35 = arith.select %32, %33, %34 : vector<1x8x8xi1>, vector<1x8x8xf32>
    %36 = vector.extract_strided_slice %25 {offsets = [0, 0, 0], sizes = [1, 8, 8], strides = [1, 1, 1]} : vector<1x8x32xbf16> to vector<1x8x8xbf16>
    %37 = vector.extract_strided_slice %27 {offsets = [0, 0, 0], sizes = [1, 8, 8], strides = [1, 1, 1]} : vector<1x8x32xbf16> to vector<1x8x8xbf16>
    %38 = vector.extract_strided_slice %29 {offsets = [0, 0, 0], sizes = [1, 8, 8], strides = [1, 1, 1]} : vector<1x8x32xbf16> to vector<1x8x8xbf16>
    "tpu.trace_start"() <{level = 10 : i32, message = "bqd,bkd->bqk"}> : () -> ()
    %cst_28 = arith.constant dense<0.000000e+00> : vector<1x8x8xf32>
    %39 = tpu.matmul %36, %37, %cst_28 {dimension_numbers = #tpu.dot_dimension_numbers<[2], [2], [1], [1], [0, 0, 0, 1, 1, 1], [0], [0]>} : vector<1x8x8xbf16>, vector<1x8x8xbf16>, vector<1x8x8xf32> -> vector<1x8x8xf32>
    "tpu.trace_stop"() : () -> ()
    %cst_29 = arith.constant 0.353553385 : f32
    %40 = vector.broadcast %cst_29 : f32 to vector<1x8x8xf32>
    %41 = arith.mulf %39, %40 : vector<1x8x8xf32>
    %42 = arith.addf %41, %35 : vector<1x8x8xf32>
    %cst_30 = arith.constant dense<0xFF800000> : vector<1x8xf32>
    %43 = vector.multi_reduction <maximumf>, %42, %cst_30 [2] : vector<1x8x8xf32> to vector<1x8xf32>
    %44 = vector.shape_cast %43 : vector<1x8xf32> to vector<1x8x1xf32>
    %45 = vector.broadcast %44 : vector<1x8x1xf32> to vector<1x8x8xf32>
    %46 = arith.subf %42, %45 : vector<1x8x8xf32>
    %47 = math.exp %46 : vector<1x8x8xf32>
    %cst_31 = arith.constant dense<0.000000e+00> : vector<1x8xf32>
    %48 = vector.multi_reduction <add>, %47, %cst_31 [2] : vector<1x8x8xf32> to vector<1x8xf32>
    %49 = vector.shape_cast %48 : vector<1x8xf32> to vector<1x8x1xf32>
    %50 = tpu.reciprocal %49 {approx = true} : vector<1x8x1xf32> -> vector<1x8x1xf32>
    %51 = vector.broadcast %50 : vector<1x8x1xf32> to vector<1x8x8xf32>
    %52 = arith.mulf %47, %51 : vector<1x8x8xf32>
    %53 = arith.truncf %52 : vector<1x8x8xf32> to vector<1x8x8xbf16>
    "tpu.trace_start"() <{level = 10 : i32, message = "bqk,bkd->bqd"}> : () -> ()
    %cst_32 = arith.constant dense<0.000000e+00> : vector<1x8x8xf32>
    %54 = tpu.matmul %53, %38, %cst_32 {dimension_numbers = #tpu.dot_dimension_numbers<[2], [1], [1], [2], [0, 0, 0, 1, 1, 2], [0], [0]>} : vector<1x8x8xbf16>, vector<1x8x8xbf16>, vector<1x8x8xf32> -> vector<1x8x8xf32>
    "tpu.trace_stop"() : () -> ()
    %c0_33 = arith.constant 0 : index
    %c0_34 = arith.constant 0 : index
    %c0_35 = arith.constant 0 : index
    %55 = vector.load %arg14[%c0_33, %c0_34, %c0_35] : memref<1x8x32xf32, #tpu.memory_space<vmem>>, vector<1x8x8xf32>
    tpu.vector_store %arg14[%c0_33, %c0_34, %c0_35], %54 {strides = array<i32>} : memref<1x8x32xf32, #tpu.memory_space<vmem>>, vector<1x8x8xf32>,
    %56 = vector.extract_strided_slice %25 {offsets = [0, 0, 8], sizes = [1, 8, 8], strides = [1, 1, 1]} : vector<1x8x32xbf16> to vector<1x8x8xbf16>
    %57 = vector.extract_strided_slice %27 {offsets = [0, 0, 8], sizes = [1, 8, 8], strides = [1, 1, 1]} : vector<1x8x32xbf16> to vector<1x8x8xbf16>
    %58 = vector.extract_strided_slice %29 {offsets = [0, 0, 8], sizes = [1, 8, 8], strides = [1, 1, 1]} : vector<1x8x32xbf16> to vector<1x8x8xbf16>
    "tpu.trace_start"() <{level = 10 : i32, message = "bqd,bkd->bqk"}> : () -> ()
    %cst_36 = arith.constant dense<0.000000e+00> : vector<1x8x8xf32>
    %59 = tpu.matmul %56, %57, %cst_36 {dimension_numbers = #tpu.dot_dimension_numbers<[2], [2], [1], [1], [0, 0, 0, 1, 1, 1], [0], [0]>} : vector<1x8x8xbf16>, vector<1x8x8xbf16>, vector<1x8x8xf32> -> vector<1x8x8xf32>
    "tpu.trace_stop"() : () -> ()
    %cst_37 = arith.constant 0.353553385 : f32
    %60 = vector.broadcast %cst_37 : f32 to vector<1x8x8xf32>
    %61 = arith.mulf %59, %60 : vector<1x8x8xf32>
    %62 = arith.addf %61, %35 : vector<1x8x8xf32>
    %cst_38 = arith.constant dense<0xFF800000> : vector<1x8xf32>
    %63 = vector.multi_reduction <maximumf>, %62, %cst_38 [2] : vector<1x8x8xf32> to vector<1x8xf32>
    %64 = vector.shape_cast %63 : vector<1x8xf32> to vector<1x8x1xf32>
    %65 = vector.broadcast %64 : vector<1x8x1xf32> to vector<1x8x8xf32>
    %66 = arith.subf %62, %65 : vector<1x8x8xf32>
    %67 = math.exp %66 : vector<1x8x8xf32>
    %cst_39 = arith.constant dense<0.000000e+00> : vector<1x8xf32>
    %68 = vector.multi_reduction <add>, %67, %cst_39 [2] : vector<1x8x8xf32> to vector<1x8xf32>
    %69 = vector.shape_cast %68 : vector<1x8xf32> to vector<1x8x1xf32>
    %70 = tpu.reciprocal %69 {approx = true} : vector<1x8x1xf32> -> vector<1x8x1xf32>
    %71 = vector.broadcast %70 : vector<1x8x1xf32> to vector<1x8x8xf32>
    %72 = arith.mulf %67, %71 : vector<1x8x8xf32>
    %73 = arith.truncf %72 : vector<1x8x8xf32> to vector<1x8x8xbf16>
    "tpu.trace_start"() <{level = 10 : i32, message = "bqk,bkd->bqd"}> : () -> ()
    %cst_40 = arith.constant dense<0.000000e+00> : vector<1x8x8xf32>
    %74 = tpu.matmul %73, %58, %cst_40 {dimension_numbers = #tpu.dot_dimension_numbers<[2], [1], [1], [2], [0, 0, 0, 1, 1, 2], [0], [0]>} : vector<1x8x8xbf16>, vector<1x8x8xbf16>, vector<1x8x8xf32> -> vector<1x8x8xf32>
    "tpu.trace_stop"() : () -> ()
    %c0_41 = arith.constant 0 : index
    %c0_42 = arith.constant 0 : index
    %c8 = arith.constant 8 : index
    %75 = vector.load %arg14[%c0_41, %c0_42, %c8] : memref<1x8x32xf32, #tpu.memory_space<vmem>>, vector<1x8x8xf32>
    tpu.vector_store %arg14[%c0_41, %c0_42, %c8], %74 {strides = array<i32>} : memref<1x8x32xf32, #tpu.memory_space<vmem>>, vector<1x8x8xf32>,
    %76 = vector.extract_strided_slice %25 {offsets = [0, 0, 16], sizes = [1, 8, 8], strides = [1, 1, 1]} : vector<1x8x32xbf16> to vector<1x8x8xbf16>
    %77 = vector.extract_strided_slice %27 {offsets = [0, 0, 16], sizes = [1, 8, 8], strides = [1, 1, 1]} : vector<1x8x32xbf16> to vector<1x8x8xbf16>
    %78 = vector.extract_strided_slice %29 {offsets = [0, 0, 16], sizes = [1, 8, 8], strides = [1, 1, 1]} : vector<1x8x32xbf16> to vector<1x8x8xbf16>
    "tpu.trace_start"() <{level = 10 : i32, message = "bqd,bkd->bqk"}> : () -> ()
    %cst_43 = arith.constant dense<0.000000e+00> : vector<1x8x8xf32>
    %79 = tpu.matmul %76, %77, %cst_43 {dimension_numbers = #tpu.dot_dimension_numbers<[2], [2], [1], [1], [0, 0, 0, 1, 1, 1], [0], [0]>} : vector<1x8x8xbf16>, vector<1x8x8xbf16>, vector<1x8x8xf32> -> vector<1x8x8xf32>
    "tpu.trace_stop"() : () -> ()
    %cst_44 = arith.constant 0.353553385 : f32
    %80 = vector.broadcast %cst_44 : f32 to vector<1x8x8xf32>
    %81 = arith.mulf %79, %80 : vector<1x8x8xf32>
    %82 = arith.addf %81, %35 : vector<1x8x8xf32>
    %cst_45 = arith.constant dense<0xFF800000> : vector<1x8xf32>
    %83 = vector.multi_reduction <maximumf>, %82, %cst_45 [2] : vector<1x8x8xf32> to vector<1x8xf32>
    %84 = vector.shape_cast %83 : vector<1x8xf32> to vector<1x8x1xf32>
    %85 = vector.broadcast %84 : vector<1x8x1xf32> to vector<1x8x8xf32>
    %86 = arith.subf %82, %85 : vector<1x8x8xf32>
    %87 = math.exp %86 : vector<1x8x8xf32>
    %cst_46 = arith.constant dense<0.000000e+00> : vector<1x8xf32>
    %88 = vector.multi_reduction <add>, %87, %cst_46 [2] : vector<1x8x8xf32> to vector<1x8xf32>
    %89 = vector.shape_cast %88 : vector<1x8xf32> to vector<1x8x1xf32>
    %90 = tpu.reciprocal %89 {approx = true} : vector<1x8x1xf32> -> vector<1x8x1xf32>
    %91 = vector.broadcast %90 : vector<1x8x1xf32> to vector<1x8x8xf32>
    %92 = arith.mulf %87, %91 : vector<1x8x8xf32>
    %93 = arith.truncf %92 : vector<1x8x8xf32> to vector<1x8x8xbf16>
    "tpu.trace_start"() <{level = 10 : i32, message = "bqk,bkd->bqd"}> : () -> ()
    %cst_47 = arith.constant dense<0.000000e+00> : vector<1x8x8xf32>
    %94 = tpu.matmul %93, %78, %cst_47 {dimension_numbers = #tpu.dot_dimension_numbers<[2], [1], [1], [2], [0, 0, 0, 1, 1, 2], [0], [0]>} : vector<1x8x8xbf16>, vector<1x8x8xbf16>, vector<1x8x8xf32> -> vector<1x8x8xf32>
    "tpu.trace_stop"() : () -> ()
    %c0_48 = arith.constant 0 : index
    %c0_49 = arith.constant 0 : index
    %c16 = arith.constant 16 : index
    %95 = vector.load %arg14[%c0_48, %c0_49, %c16] : memref<1x8x32xf32, #tpu.memory_space<vmem>>, vector<1x8x8xf32>
    tpu.vector_store %arg14[%c0_48, %c0_49, %c16], %94 {strides = array<i32>} : memref<1x8x32xf32, #tpu.memory_space<vmem>>, vector<1x8x8xf32>,
    %96 = vector.extract_strided_slice %25 {offsets = [0, 0, 24], sizes = [1, 8, 8], strides = [1, 1, 1]} : vector<1x8x32xbf16> to vector<1x8x8xbf16>
    %97 = vector.extract_strided_slice %27 {offsets = [0, 0, 24], sizes = [1, 8, 8], strides = [1, 1, 1]} : vector<1x8x32xbf16> to vector<1x8x8xbf16>
    %98 = vector.extract_strided_slice %29 {offsets = [0, 0, 24], sizes = [1, 8, 8], strides = [1, 1, 1]} : vector<1x8x32xbf16> to vector<1x8x8xbf16>
    "tpu.trace_start"() <{level = 10 : i32, message = "bqd,bkd->bqk"}> : () -> ()
    %cst_50 = arith.constant dense<0.000000e+00> : vector<1x8x8xf32>
    %99 = tpu.matmul %96, %97, %cst_50 {dimension_numbers = #tpu.dot_dimension_numbers<[2], [2], [1], [1], [0, 0, 0, 1, 1, 1], [0], [0]>} : vector<1x8x8xbf16>, vector<1x8x8xbf16>, vector<1x8x8xf32> -> vector<1x8x8xf32>
    "tpu.trace_stop"() : () -> ()
    %cst_51 = arith.constant 0.353553385 : f32
    %100 = vector.broadcast %cst_51 : f32 to vector<1x8x8xf32>
    %101 = arith.mulf %99, %100 : vector<1x8x8xf32>
    %102 = arith.addf %101, %35 : vector<1x8x8xf32>
    %cst_52 = arith.constant dense<0xFF800000> : vector<1x8xf32>
    %103 = vector.multi_reduction <maximumf>, %102, %cst_52 [2] : vector<1x8x8xf32> to vector<1x8xf32>
    %104 = vector.shape_cast %103 : vector<1x8xf32> to vector<1x8x1xf32>
    %105 = vector.broadcast %104 : vector<1x8x1xf32> to vector<1x8x8xf32>
    %106 = arith.subf %102, %105 : vector<1x8x8xf32>
    %107 = math.exp %106 : vector<1x8x8xf32>
    %cst_53 = arith.constant dense<0.000000e+00> : vector<1x8xf32>
    %108 = vector.multi_reduction <add>, %107, %cst_53 [2] : vector<1x8x8xf32> to vector<1x8xf32>
    %109 = vector.shape_cast %108 : vector<1x8xf32> to vector<1x8x1xf32>
    %110 = tpu.reciprocal %109 {approx = true} : vector<1x8x1xf32> -> vector<1x8x1xf32>
    %111 = vector.broadcast %110 : vector<1x8x1xf32> to vector<1x8x8xf32>
    %112 = arith.mulf %107, %111 : vector<1x8x8xf32>
    %113 = arith.truncf %112 : vector<1x8x8xf32> to vector<1x8x8xbf16>
    "tpu.trace_start"() <{level = 10 : i32, message = "bqk,bkd->bqd"}> : () -> ()
    %cst_54 = arith.constant dense<0.000000e+00> : vector<1x8x8xf32>
    %114 = tpu.matmul %113, %98, %cst_54 {dimension_numbers = #tpu.dot_dimension_numbers<[2], [1], [1], [2], [0, 0, 0, 1, 1, 2], [0], [0]>} : vector<1x8x8xbf16>, vector<1x8x8xbf16>, vector<1x8x8xf32> -> vector<1x8x8xf32>
    "tpu.trace_stop"() : () -> ()
    %c0_55 = arith.constant 0 : index
    %c0_56 = arith.constant 0 : index
    %c24 = arith.constant 24 : index
    %115 = vector.load %arg14[%c0_55, %c0_56, %c24] : memref<1x8x32xf32, #tpu.memory_space<vmem>>, vector<1x8x8xf32>
    tpu.vector_store %arg14[%c0_55, %c0_56, %c24], %114 {strides = array<i32>} : memref<1x8x32xf32, #tpu.memory_space<vmem>>, vector<1x8x8xf32>,
    %c0_57 = arith.constant 0 : index
    %c0_58 = arith.constant 0 : index
    %c0_59 = arith.constant 0 : index
    %116 = vector.load %arg14[%c0_57, %c0_58, %c0_59] : memref<1x8x32xf32, #tpu.memory_space<vmem>>, vector<1x8x32xf32>
    %117 = arith.truncf %116 : vector<1x8x32xf32> to vector<1x8x32xbf16>
    %118 = vector.shape_cast %117 : vector<1x8x32xbf16> to vector<8x32xbf16>
    %c0_60 = arith.constant 0 : index
    %c0_61 = arith.constant 0 : index
    %119 = vector.load %arg11[%c0_60, %c0_61] : memref<32x32xbf16, #tpu.memory_space<vmem>>, vector<32x32xbf16>
    %cst_62 = arith.constant dense<0.000000e+00> : vector<8x32xf32>
    %120 = tpu.matmul %118, %119, %cst_62 {dimension_numbers = #tpu.dot_dimension_numbers<[1], [1], [0], [0], [0, 0, 1, 0], [], []>} : vector<8x32xbf16>, vector<32x32xbf16>, vector<8x32xf32> -> vector<8x32xf32>
    %c0_63 = arith.constant 0 : index
    %c0_64 = arith.constant 0 : index
    %121 = vector.load %arg12[%c0_63, %c0_64] : memref<1x32xf32, #tpu.memory_space<vmem>>, vector<1x32xf32>
    %122 = vector.broadcast %121 : vector<1x32xf32> to vector<8x32xf32>
    %123 = arith.addf %120, %122 : vector<8x32xf32>
    %124 = vector.shape_cast %123 : vector<8x32xf32> to vector<1x8x32xf32>
    %c0_65 = arith.constant 0 : index
    %c0_66 = arith.constant 0 : index
    %c0_67 = arith.constant 0 : index
    %125 = vector.load %arg13[%c0_65, %c0_66, %c0_67] : memref<1x8x32xf32, #tpu.memory_space<vmem>>, vector<1x8x32xf32>
    tpu.vector_store %arg13[%c0_65, %c0_66, %c0_67], %124 {strides = array<i32>} : memref<1x8x32xf32, #tpu.memory_space<vmem>>, vector<1x8x32xf32>,
    return
  }
  func.func @transform_0(%arg0: i32) -> (i32, i32, i32) {
    %c0_i32 = arith.constant 0 : i32
    %c0_i32_0 = arith.constant 0 : i32
    %c0_i32_1 = arith.constant 0 : i32
    return %arg0, %c0_i32, %c0_i32_0 : i32, i32, i32
  }
  func.func @transform_1(%arg0: i32) -> (i32, i32, i32) {
    %c0_i32 = arith.constant 0 : i32
    %c0_i32_0 = arith.constant 0 : i32
    %c0_i32_1 = arith.constant 0 : i32
    return %arg0, %c0_i32, %c0_i32_0 : i32, i32, i32
  }
  func.func @transform_2(%arg0: i32) -> (i32, i32, i32) {
    %c0_i32 = arith.constant 0 : i32
    %c0_i32_0 = arith.constant 0 : i32
    %c0_i32_1 = arith.constant 0 : i32
    return %arg0, %c0_i32, %c0_i32_0 : i32, i32, i32
  }
  func.func @transform_3(%arg0: i32) -> (i32, i32, i32) {
    %c0_i32 = arith.constant 0 : i32
    %c0_i32_0 = arith.constant 0 : i32
    %c0_i32_1 = arith.constant 0 : i32
    return %arg0, %c0_i32, %c0_i32_0 : i32, i32, i32
  }
  func.func @transform_4(%arg0: i32) -> (i32, i32) {
    %c0_i32 = arith.constant 0 : i32
    %c0_i32_0 = arith.constant 0 : i32
    %c0_i32_1 = arith.constant 0 : i32
    return %c0_i32, %c0_i32_0 : i32, i32
  }
  func.func @transform_5(%arg0: i32) -> (i32, i32) {
    %c0_i32 = arith.constant 0 : i32
    %c0_i32_0 = arith.constant 0 : i32
    %c0_i32_1 = arith.constant 0 : i32
    return %c0_i32, %c0_i32_0 : i32, i32
  }
  func.func @transform_6(%arg0: i32) -> (i32, i32) {
    %c0_i32 = arith.constant 0 : i32
    %c0_i32_0 = arith.constant 0 : i32
    %c0_i32_1 = arith.constant 0 : i32
    return %c0_i32, %c0_i32_0 : i32, i32
  }
  func.func @transform_7(%arg0: i32) -> (i32, i32) {
    %c0_i32 = arith.constant 0 : i32
    %c0_i32_0 = arith.constant 0 : i32
    %c0_i32_1 = arith.constant 0 : i32
    return %c0_i32, %c0_i32_0 : i32, i32
  }
  func.func @transform_8(%arg0: i32) -> (i32, i32) {
    %c0_i32 = arith.constant 0 : i32
    %c0_i32_0 = arith.constant 0 : i32
    %c0_i32_1 = arith.constant 0 : i32
    return %c0_i32, %c0_i32_0 : i32, i32
  }
  func.func @transform_9(%arg0: i32) -> (i32, i32) {
    %c0_i32 = arith.constant 0 : i32
    %c0_i32_0 = arith.constant 0 : i32
    %c0_i32_1 = arith.constant 0 : i32
    return %c0_i32, %c0_i32_0 : i32, i32
  }
  func.func @transform_10(%arg0: i32) -> (i32, i32) {
    %c0_i32 = arith.constant 0 : i32
    %c0_i32_0 = arith.constant 0 : i32
    %c0_i32_1 = arith.constant 0 : i32
    return %c0_i32, %c0_i32_0 : i32, i32
  }
  func.func @transform_11(%arg0: i32) -> (i32, i32) {
    %c0_i32 = arith.constant 0 : i32
    %c0_i32_0 = arith.constant 0 : i32
    %c0_i32_1 = arith.constant 0 : i32
    return %c0_i32, %c0_i32_0 : i32, i32
  }
  func.func @transform_12(%arg0: i32) -> (i32, i32, i32) {
    %c0_i32 = arith.constant 0 : i32
    %c0_i32_0 = arith.constant 0 : i32
    %c0_i32_1 = arith.constant 0 : i32
    return %arg0, %c0_i32, %c0_i32_0 : i32, i32, i32
  }
}

</mosaic_0001>

<llo_original>
// kernel: tpu_custom_call.1
$region0: #{tpu_custom_call.1}
  #allocation0 [shape = 'u32[]', space=smem, size = 0x4, offset = 0x4, fixed_abs, tag = 'smem constant byte address 0x4 - core index']
  #allocation1 [shape = 'u32[72,128]{1,0:T(1,128)}', space=vmem, size = 0x9000, scoped, tag = 'internal scratch']
  #allocation2 [shape = 'f32[1,8,32]{2,1,0:T(8,128)}', space=vmem, size = 0x1000, scoped, tag = 'scratch operand']
  %s0 = inlined_call_operand.hbm [shape: f32[2,8,32], index: 0, kind: input, shape index: {}]
  %s1 = inlined_call_operand.hbm [shape: f32[2,8,32], index: 1, kind: input, shape index: {}]
  %s2 = inlined_call_operand.hbm [shape: f32[2,8,32], index: 2, kind: input, shape index: {}]
  %s3 = inlined_call_operand.hbm [shape: f32[2,8,8], index: 3, kind: input, shape index: {}]
  %s4 = inlined_call_operand.hbm [shape: bf16[32,32], index: 4, kind: input, shape index: {}]
  %s5 = inlined_call_operand.vmem [shape: f32[1,32], index: 5, kind: input, shape index: {}]
  %s6 = inlined_call_operand.hbm [shape: bf16[32,32], index: 6, kind: input, shape index: {}]
  %s7 = inlined_call_operand.vmem [shape: f32[1,32], index: 7, kind: input, shape index: {}]
  %s8 = inlined_call_operand.hbm [shape: bf16[32,32], index: 8, kind: input, shape index: {}]
  %s9 = inlined_call_operand.vmem [shape: f32[1,32], index: 9, kind: input, shape index: {}]
  %s10 = inlined_call_operand.hbm [shape: bf16[32,32], index: 10, kind: input, shape index: {}]
  %s11 = inlined_call_operand.vmem [shape: f32[1,32], index: 11, kind: input, shape index: {}]
  %s12 = inlined_call_operand.hbm [shape: f32[2,8,32], index: 12, kind: output, shape index: {}]
  %s13 = sld [smem:[#allocation0]]
  $region113: #{tpu_custom_call.1} parent=0
    _
  %s15 = ssub.s32 1, %s13
  %s16 = scalar_select 0, %s15, %s13
  $region1: #{tpu_custom_call.1} parent=0
    #allocation3 [shape = 'u8[8192]{0}', space=vmem, size = 0x2000, scoped, tag = 'input window, operand 0']
    #allocation4 [shape = 's32[2]{0}', space=sflag, size = 0x8, scoped, tag = 'scoped memory for tpu_custom_call.1']
    #allocation5 [shape = 's32[2]{0}', space=sflag, size = 0x8, scoped, tag = 'scoped memory for tpu_custom_call.1']
    #allocation6 [shape = 'u8[8192]{0}', space=vmem, size = 0x2000, scoped, tag = 'input window, operand 1']
    #allocation7 [shape = 's32[2]{0}', space=sflag, size = 0x8, scoped, tag = 'scoped memory for tpu_custom_call.1']
    #allocation8 [shape = 'u8[8192]{0}', space=vmem, size = 0x2000, scoped, tag = 'input window, operand 2']
    #allocation9 [shape = 'u8[8192]{0}', space=vmem, size = 0x2000, scoped, tag = 'input window, operand 3']
    #allocation10 [shape = 's32[2]{0}', space=sflag, size = 0x8, scoped, tag = 'scoped memory for tpu_custom_call.1']
    #allocation11 [shape = 'u8[8192]{0}', space=vmem, size = 0x2000, scoped, tag = 'input window, operand 4, single buffered']
    #allocation12 [shape = 'u8[8192]{0}', space=vmem, size = 0x2000, scoped, tag = 'input window, operand 6, single buffered']
    #allocation13 [shape = 's32[1]{0}', space=sflag, size = 0x4, scoped, tag = 'scoped memory for tpu_custom_call.1']
    #allocation14 [shape = 'u8[8192]{0}', space=vmem, size = 0x2000, scoped, tag = 'input window, operand 8, single buffered']
    #allocation15 [shape = 'u8[8192]{0}', space=vmem, size = 0x2000, scoped, tag = 'input window, operand 10, single buffered']
    #allocation16 [shape = 's32[1]{0}', space=sflag, size = 0x4, scoped, tag = 'scoped memory for tpu_custom_call.1']
    #allocation17 [shape = 'u8[8192]{0}', space=vmem, size = 0x2000, scoped, tag = 'output window, operand 0']
    %17 = vsyncpa [#allocation4], 0
    %s18 = scalar_lea.sflag [#allocation4], 1
    %19 = vsyncpa %s18, 0
    %20 = vsyncpa [#allocation7], 0
    %s21 = scalar_lea.sflag [#allocation7], 1
    %22 = vsyncpa %s21, 0
    %23 = vsyncpa [#allocation10], 0
    %s24 = scalar_lea.sflag [#allocation10], 1
    %25 = vsyncpa %s24, 0
    %26 = vsyncpa [#allocation13], 0
    %27 = vsyncpa [#allocation16], 0
    %28 = vsyncpa [#allocation5], 0
    %s29 = scalar_lea.sflag [#allocation5], 1
    %30 = vsyncpa %s29, 0
    loop: start=0, step=1, limit=4
    $region2: #{tpu_custom_call.1} parent=1 // loop_pre_header
      _
    $region3: #{tpu_custom_call.1} parent=1 // loop_header
      %s32 = sphi 0, %s36
      %p33 = scmp.ge.s32.totalorder %s32, 4
      %s42 = sphi 0, %s44
      %s45 = sphi 0, %s42
      %s46 = sphi 0, %s45
      %s62 = sphi 0, %s46
      %s68 = sphi 0, %s70
      %s71 = sphi 0, %s68
      %s72 = sphi 0, %s71
      %s88 = sphi 0, %s72
      %s94 = sphi 0, %s96
      %s97 = sphi 0, %s94
      %s98 = sphi 0, %s97
      %s114 = sphi 0, %s98
      %s120 = sphi 0, %s122
      %s123 = sphi 0, %s120
      %s124 = sphi 0, %s123
      %s140 = sphi 0, %s124
      %s144 = sphi 0, %s144
      %s146 = sphi 0, %s144
      %s147 = sphi 0, %s146
      %s161 = sphi 0, %s147
      %s165 = sphi 0, %s165
      %s167 = sphi 0, %s165
      %s168 = sphi 0, %s167
      %s182 = sphi 0, %s168
      %s186 = sphi 0, %s186
      %s188 = sphi 0, %s186
      %s189 = sphi 0, %s188
      %s203 = sphi 0, %s189
      %s207 = sphi 0, %s207
      %s209 = sphi 0, %s207
      %s210 = sphi 0, %s209
      %s224 = sphi 0, %s210
      %s228 = sphi 0, %s228
      %s230 = sphi 0, %s228
      %s231 = sphi 0, %s230
      %s245 = sphi 0, %s231
      %s249 = sphi 0, %s249
      %s251 = sphi 0, %s249
      %s252 = sphi 0, %s251
      %s266 = sphi 0, %s252
      %s270 = sphi 0, %s270
      %s272 = sphi 0, %s270
      %s273 = sphi 0, %s272
      %s287 = sphi 0, %s273
      %s291 = sphi 0, %s291
      %s293 = sphi 0, %s291
      %s294 = sphi 0, %s293
      %s308 = sphi 0, %s294
      %s314 = sphi 0, %s316
      %s317 = sphi 0, %s314
      %s318 = sphi 0, %s317
      %s334 = sphi 0, %s318
    $region4: #{tpu_custom_call.1} parent=1 // loop_header_branch
      %35 = sbr.rel (%p33) target = $region8
    $region5: #{tpu_custom_call.1} parent=1 // loop_body
      %s37 = ssub.s32 %s32, 1
      %s38 = ssub.s32 %s32, 2
      %s39 = sadd.s32 %s32, 1
      %s40 = ssub.s32 %s32, %s39
      %p41 = scmp.eq.s32.totalorder %s40, 0
      %s43 = sadd.s32 %s42, 1
      %s44 = scalar_select %p41, %s42, %s43
      %p47 = pneg %p41
      %p48 = scmp.eq.s32.totalorder %s32, 1
      %p49 = por %p47, %p48
      %p50 = scmp.ne.s32.totalorder %s42, %s45
      %p51 = scmp.eq.s32.totalorder %s32, 0
      %p52 = por %p50, %p51
      %p53 = scmp.ne.s32.totalorder %s42, %s45
      %p54 = scmp.eq.s32.totalorder %s37, 1
      %p55 = por %p53, %p54
      %p56 = scmp.ne.s32.totalorder %s45, %s46
      %p57 = scmp.eq.s32.totalorder %s37, 0
      %p58 = por %p56, %p57
      %p59 = scmp.ne.s32.totalorder %s45, %s46
      %p60 = scmp.eq.s32.totalorder %s38, 1
      %p61 = por %p59, %p60
      %p63 = scmp.ne.s32.totalorder %s46, %s62
      %p64 = scmp.eq.s32.totalorder %s38, 0
      %p65 = por %p63, %p64
      %s66 = ssub.s32 %s32, %s39
      %p67 = scmp.eq.s32.totalorder %s66, 0
      %s69 = sadd.s32 %s68, 1
      %s70 = scalar_select %p67, %s68, %s69
      %p73 = pneg %p67
      %p74 = scmp.eq.s32.totalorder %s32, 1
      %p75 = por %p73, %p74
      %p76 = scmp.ne.s32.totalorder %s68, %s71
      %p77 = scmp.eq.s32.totalorder %s32, 0
      %p78 = por %p76, %p77
      %p79 = scmp.ne.s32.totalorder %s68, %s71
      %p80 = scmp.eq.s32.totalorder %s37, 1
      %p81 = por %p79, %p80
      %p82 = scmp.ne.s32.totalorder %s71, %s72
      %p83 = scmp.eq.s32.totalorder %s37, 0
      %p84 = por %p82, %p83
      %p85 = scmp.ne.s32.totalorder %s71, %s72
      %p86 = scmp.eq.s32.totalorder %s38, 1
      %p87 = por %p85, %p86
      %p89 = scmp.ne.s32.totalorder %s72, %s88
      %p90 = scmp.eq.s32.totalorder %s38, 0
      %p91 = por %p89, %p90
      %s92 = ssub.s32 %s32, %s39
      %p93 = scmp.eq.s32.totalorder %s92, 0
      %s95 = sadd.s32 %s94, 1
      %s96 = scalar_select %p93, %s94, %s95
      %p99 = pneg %p93
      %p100 = scmp.eq.s32.totalorder %s32, 1
      %p101 = por %p99, %p100
      %p102 = scmp.ne.s32.totalorder %s94, %s97
      %p103 = scmp.eq.s32.totalorder %s32, 0
      %p104 = por %p102, %p103
      %p105 = scmp.ne.s32.totalorder %s94, %s97
      %p106 = scmp.eq.s32.totalorder %s37, 1
      %p107 = por %p105, %p106
      %p108 = scmp.ne.s32.totalorder %s97, %s98
      %p109 = scmp.eq.s32.totalorder %s37, 0
      %p110 = por %p108, %p109
      %p111 = scmp.ne.s32.totalorder %s97, %s98
      %p112 = scmp.eq.s32.totalorder %s38, 1
      %p113 = por %p111, %p112
      %p115 = scmp.ne.s32.totalorder %s98, %s114
      %p116 = scmp.eq.s32.totalorder %s38, 0
      %p117 = por %p115, %p116
      %s118 = ssub.s32 %s32, %s39
      %p119 = scmp.eq.s32.totalorder %s118, 0
      %s121 = sadd.s32 %s120, 1
      %s122 = scalar_select %p119, %s120, %s121
      %p125 = pneg %p119
      %p126 = scmp.eq.s32.totalorder %s32, 1
      %p127 = por %p125, %p126
      %p128 = scmp.ne.s32.totalorder %s120, %s123
      %p129 = scmp.eq.s32.totalorder %s32, 0
      %p130 = por %p128, %p129
      %p131 = scmp.ne.s32.totalorder %s120, %s123
      %p132 = scmp.eq.s32.totalorder %s37, 1
      %p133 = por %p131, %p132
      %p134 = scmp.ne.s32.totalorder %s123, %s124
      %p135 = scmp.eq.s32.totalorder %s37, 0
      %p136 = por %p134, %p135
      %p137 = scmp.ne.s32.totalorder %s123, %s124
      %p138 = scmp.eq.s32.totalorder %s38, 1
      %p139 = por %p137, %p138
      %p141 = scmp.ne.s32.totalorder %s124, %s140
      %p142 = scmp.eq.s32.totalorder %s38, 0
      %p143 = por %p141, %p142
      %s145 = sadd.s32 %s144, 1
      %p148 = scmp.eq.s32.totalorder %s32, 1
      %p149 = scmp.ne.s32.totalorder %s144, %s146
      %p150 = scmp.eq.s32.totalorder %s32, 0
      %p151 = por %p149, %p150
      %p152 = scmp.ne.s32.totalorder %s144, %s146
      %p153 = scmp.eq.s32.totalorder %s37, 1
      %p154 = por %p152, %p153
      %p155 = scmp.ne.s32.totalorder %s146, %s147
      %p156 = scmp.eq.s32.totalorder %s37, 0
      %p157 = por %p155, %p156
      %p158 = scmp.ne.s32.totalorder %s146, %s147
      %p159 = scmp.eq.s32.totalorder %s38, 1
      %p160 = por %p158, %p159
      %p162 = scmp.ne.s32.totalorder %s147, %s161
      %p163 = scmp.eq.s32.totalorder %s38, 0
      %p164 = por %p162, %p163
      %s166 = sadd.s32 %s165, 1
      %p169 = scmp.eq.s32.totalorder %s32, 1
      %p170 = scmp.ne.s32.totalorder %s165, %s167
      %p171 = scmp.eq.s32.totalorder %s32, 0
      %p172 = por %p170, %p171
      %p173 = scmp.ne.s32.totalorder %s165, %s167
      %p174 = scmp.eq.s32.totalorder %s37, 1
      %p175 = por %p173, %p174
      %p176 = scmp.ne.s32.totalorder %s167, %s168
      %p177 = scmp.eq.s32.totalorder %s37, 0
      %p178 = por %p176, %p177
      %p179 = scmp.ne.s32.totalorder %s167, %s168
      %p180 = scmp.eq.s32.totalorder %s38, 1
      %p181 = por %p179, %p180
      %p183 = scmp.ne.s32.totalorder %s168, %s182
      %p184 = scmp.eq.s32.totalorder %s38, 0
      %p185 = por %p183, %p184
      %s187 = sadd.s32 %s186, 1
      %p190 = scmp.eq.s32.totalorder %s32, 1
      %p191 = scmp.ne.s32.totalorder %s186, %s188
      %p192 = scmp.eq.s32.totalorder %s32, 0
      %p193 = por %p191, %p192
      %p194 = scmp.ne.s32.totalorder %s186, %s188
      %p195 = scmp.eq.s32.totalorder %s37, 1
      %p196 = por %p194, %p195
      %p197 = scmp.ne.s32.totalorder %s188, %s189
      %p198 = scmp.eq.s32.totalorder %s37, 0
      %p199 = por %p197, %p198
      %p200 = scmp.ne.s32.totalorder %s188, %s189
      %p201 = scmp.eq.s32.totalorder %s38, 1
      %p202 = por %p200, %p201
      %p204 = scmp.ne.s32.totalorder %s189, %s203
      %p205 = scmp.eq.s32.totalorder %s38, 0
      %p206 = por %p204, %p205
      %s208 = sadd.s32 %s207, 1
      %p211 = scmp.eq.s32.totalorder %s32, 1
      %p212 = scmp.ne.s32.totalorder %s207, %s209
      %p213 = scmp.eq.s32.totalorder %s32, 0
      %p214 = por %p212, %p213
      %p215 = scmp.ne.s32.totalorder %s207, %s209
      %p216 = scmp.eq.s32.totalorder %s37, 1
      %p217 = por %p215, %p216
      %p218 = scmp.ne.s32.totalorder %s209, %s210
      %p219 = scmp.eq.s32.totalorder %s37, 0
      %p220 = por %p218, %p219
      %p221 = scmp.ne.s32.totalorder %s209, %s210
      %p222 = scmp.eq.s32.totalorder %s38, 1
      %p223 = por %p221, %p222
      %p225 = scmp.ne.s32.totalorder %s210, %s224
      %p226 = scmp.eq.s32.totalorder %s38, 0
      %p227 = por %p225, %p226
      %s229 = sadd.s32 %s228, 1
      %p232 = scmp.eq.s32.totalorder %s32, 1
      %p233 = scmp.ne.s32.totalorder %s228, %s230
      %p234 = scmp.eq.s32.totalorder %s32, 0
      %p235 = por %p233, %p234
      %p236 = scmp.ne.s32.totalorder %s228, %s230
      %p237 = scmp.eq.s32.totalorder %s37, 1
      %p238 = por %p236, %p237
      %p239 = scmp.ne.s32.totalorder %s230, %s231
      %p240 = scmp.eq.s32.totalorder %s37, 0
      %p241 = por %p239, %p240
      %p242 = scmp.ne.s32.totalorder %s230, %s231
      %p243 = scmp.eq.s32.totalorder %s38, 1
      %p244 = por %p242, %p243
      %p246 = scmp.ne.s32.totalorder %s231, %s245
      %p247 = scmp.eq.s32.totalorder %s38, 0
      %p248 = por %p246, %p247
      %s250 = sadd.s32 %s249, 1
      %p253 = scmp.eq.s32.totalorder %s32, 1
      %p254 = scmp.ne.s32.totalorder %s249, %s251
      %p255 = scmp.eq.s32.totalorder %s32, 0
      %p256 = por %p254, %p255
      %p257 = scmp.ne.s32.totalorder %s249, %s251
      %p258 = scmp.eq.s32.totalorder %s37, 1
      %p259 = por %p257, %p258
      %p260 = scmp.ne.s32.totalorder %s251, %s252
      %p261 = scmp.eq.s32.totalorder %s37, 0
      %p262 = por %p260, %p261
      %p263 = scmp.ne.s32.totalorder %s251, %s252
      %p264 = scmp.eq.s32.totalorder %s38, 1
      %p265 = por %p263, %p264
      %p267 = scmp.ne.s32.totalorder %s252, %s266
      %p268 = scmp.eq.s32.totalorder %s38, 0
      %p269 = por %p267, %p268
      %s271 = sadd.s32 %s270, 1
      %p274 = scmp.eq.s32.totalorder %s32, 1
      %p275 = scmp.ne.s32.totalorder %s270, %s272
      %p276 = scmp.eq.s32.totalorder %s32, 0
      %p277 = por %p275, %p276
      %p278 = scmp.ne.s32.totalorder %s270, %s272
      %p279 = scmp.eq.s32.totalorder %s37, 1
      %p280 = por %p278, %p279
      %p281 = scmp.ne.s32.totalorder %s272, %s273
      %p282 = scmp.eq.s32.totalorder %s37, 0
      %p283 = por %p281, %p282
      %p284 = scmp.ne.s32.totalorder %s272, %s273
      %p285 = scmp.eq.s32.totalorder %s38, 1
      %p286 = por %p284, %p285
      %p288 = scmp.ne.s32.totalorder %s273, %s287
      %p289 = scmp.eq.s32.totalorder %s38, 0
      %p290 = por %p288, %p289
      %s292 = sadd.s32 %s291, 1
      %p295 = scmp.eq.s32.totalorder %s32, 1
      %p296 = scmp.ne.s32.totalorder %s291, %s293
      %p297 = scmp.eq.s32.totalorder %s32, 0
      %p298 = por %p296, %p297
      %p299 = scmp.ne.s32.totalorder %s291, %s293
      %p300 = scmp.eq.s32.totalorder %s37, 1
      %p301 = por %p299, %p300
      %p302 = scmp.ne.s32.totalorder %s293, %s294
      %p303 = scmp.eq.s32.totalorder %s37, 0
      %p304 = por %p302, %p303
      %p305 = scmp.ne.s32.totalorder %s293, %s294
      %p306 = scmp.eq.s32.totalorder %s38, 1
      %p307 = por %p305, %p306
      %p309 = scmp.ne.s32.totalorder %s294, %s308
      %p310 = scmp.eq.s32.totalorder %s38, 0
      %p311 = por %p309, %p310
      %s312 = ssub.s32 %s32, %s39
      %p313 = scmp.eq.s32.totalorder %s312, 0
      %s315 = sadd.s32 %s314, 1
      %s316 = scalar_select %p313, %s314, %s315
      %p319 = pneg %p313
      %p320 = scmp.eq.s32.totalorder %s32, 1
      %p321 = por %p319, %p320
      %p322 = scmp.ne.s32.totalorder %s314, %s317
      %p323 = scmp.eq.s32.totalorder %s32, 0
      %p324 = por %p322, %p323
      %p325 = scmp.ne.s32.totalorder %s314, %s317
      %p326 = scmp.eq.s32.totalorder %s37, 1
      %p327 = por %p325, %p326
      %p328 = scmp.ne.s32.totalorder %s317, %s318
      %p329 = scmp.eq.s32.totalorder %s37, 0
      %p330 = por %p328, %p329
      %p331 = scmp.ne.s32.totalorder %s317, %s318
      %p332 = scmp.eq.s32.totalorder %s38, 1
      %p333 = por %p331, %p332
      %p335 = scmp.ne.s32.totalorder %s318, %s334
      %p336 = scmp.eq.s32.totalorder %s38, 0
      %p337 = por %p335, %p336
      %p338 = scmp.le.s32.totalorder 1, %s32
      %p339 = scmp.lt.s32.totalorder %s32, 3
      %p340 = pnand %p338, %p339
      %p341 = pneg %p340
      // Predicated region
      $region9: #{tpu_custom_call.1} parent=5 // pred_check
        _
      $region10: #{tpu_custom_call.1} parent=5 // pred_check_branch
        %343 = sbr.rel (%p340) target = $region12
      $region11: #{tpu_custom_call.1} parent=5 // pred_region
        %s344 = ssub.s32 %s32, 1
        // Predicated region
        $region13: #{tpu_custom_call.1} parent=11 // pred_check
          %p345 = pneg %p157
        $region14: #{tpu_custom_call.1} parent=11 // pred_check_branch
          %347 = sbr.rel (%p345) target = $region16
        $region15: #{tpu_custom_call.1} parent=11 // pred_region
          %349 = vsyncadd [#allocation10], 0
          %s350 = sshll.u32 %s4, 4
          %s351 = int_to_ptr.hbm [resolvable:$true] %s350
          %s352 = sshll.u32 [#allocation11], 4
          %s353 = int_to_ptr.vmem [resolvable:$true] %s352
          %358 = dma.hbm_to_vmem [thread:$0]  %s351, 256, %s353, [#allocation10], 64, 64, 4
        $region16: #{tpu_custom_call.1} parent=11 // pred_fallthru
          _
        // Predicated region
        $region17: #{tpu_custom_call.1} parent=11 // pred_check
          %p359 = pneg %p178
        $region18: #{tpu_custom_call.1} parent=11 // pred_check_branch
          %361 = sbr.rel (%p359) target = $region20
        $region19: #{tpu_custom_call.1} parent=11 // pred_region
          _
        $region20: #{tpu_custom_call.1} parent=11 // pred_fallthru
          _
        // Predicated region
        $region21: #{tpu_custom_call.1} parent=11 // pred_check
          %p362 = pneg %p199
        $region22: #{tpu_custom_call.1} parent=11 // pred_check_branch
          %364 = sbr.rel (%p362) target = $region24
        $region23: #{tpu_custom_call.1} parent=11 // pred_region
          %366 = vsyncadd [#allocation13], 0
          %s367 = sshll.u32 %s6, 4
          %s368 = int_to_ptr.hbm [resolvable:$true] %s367
          %s369 = sshll.u32 [#allocation12], 4
          %s370 = int_to_ptr.vmem [resolvable:$true] %s369
          %375 = dma.hbm_to_vmem [thread:$0]  %s368, 256, %s370, [#allocation13], 64, 64, 4
        $region24: #{tpu_custom_call.1} parent=11 // pred_fallthru
          _
        // Predicated region
        $region25: #{tpu_custom_call.1} parent=11 // pred_check
          %p376 = pneg %p220
        $region26: #{tpu_custom_call.1} parent=11 // pred_check_branch
          %378 = sbr.rel (%p376) target = $region28
        $region27: #{tpu_custom_call.1} parent=11 // pred_region
          _
        $region28: #{tpu_custom_call.1} parent=11 // pred_fallthru
          _
        // Predicated region
        $region29: #{tpu_custom_call.1} parent=11 // pred_check
          %p379 = pneg %p241
        $region30: #{tpu_custom_call.1} parent=11 // pred_check_branch
          %381 = sbr.rel (%p379) target = $region32
        $region31: #{tpu_custom_call.1} parent=11 // pred_region
          %383 = vsyncadd [#allocation13], 0
          %s384 = sshll.u32 %s8, 4
          %s385 = int_to_ptr.hbm [resolvable:$true] %s384
          %s386 = sshll.u32 [#allocation14], 4
          %s387 = int_to_ptr.vmem [resolvable:$true] %s386
          %392 = dma.hbm_to_vmem [thread:$0]  %s385, 256, %s387, [#allocation13], 64, 64, 4
        $region32: #{tpu_custom_call.1} parent=11 // pred_fallthru
          _
        // Predicated region
        $region33: #{tpu_custom_call.1} parent=11 // pred_check
          %p393 = pneg %p262
        $region34: #{tpu_custom_call.1} parent=11 // pred_check_branch
          %395 = sbr.rel (%p393) target = $region36
        $region35: #{tpu_custom_call.1} parent=11 // pred_region
          _
        $region36: #{tpu_custom_call.1} parent=11 // pred_fallthru
          _
        // Predicated region
        $region37: #{tpu_custom_call.1} parent=11 // pred_check
          %p396 = pneg %p283
        $region38: #{tpu_custom_call.1} parent=11 // pred_check_branch
          %398 = sbr.rel (%p396) target = $region40
        $region39: #{tpu_custom_call.1} parent=11 // pred_region
          %400 = vsyncadd [#allocation16], 0
          %s401 = sshll.u32 %s10, 4
          %s402 = int_to_ptr.hbm [resolvable:$true] %s401
          %s403 = sshll.u32 [#allocation15], 4
          %s404 = int_to_ptr.vmem [resolvable:$true] %s403
          %409 = dma.hbm_to_vmem [thread:$0]  %s402, 256, %s404, [#allocation16], 64, 64, 4
        $region40: #{tpu_custom_call.1} parent=11 // pred_fallthru
          _
        // Predicated region
        $region41: #{tpu_custom_call.1} parent=11 // pred_check
          %p410 = pneg %p304
        $region42: #{tpu_custom_call.1} parent=11 // pred_check_branch
          %412 = sbr.rel (%p410) target = $region44
        $region43: #{tpu_custom_call.1} parent=11 // pred_region
          _
        $region44: #{tpu_custom_call.1} parent=11 // pred_fallthru
          _
      $region12: #{tpu_custom_call.1} parent=5 // pred_fallthru
        _
      %p413 = scmp.lt.s32.totalorder %s32, 2
      // Predicated region
      $region45: #{tpu_custom_call.1} parent=5 // pred_check
        %p414 = pneg %p413
      $region46: #{tpu_custom_call.1} parent=5 // pred_check_branch
        %416 = sbr.rel (%p414) target = $region48
      $region47: #{tpu_custom_call.1} parent=5 // pred_region
        // Predicated region
        $region49: #{tpu_custom_call.1} parent=47 // pred_check
          %p417 = pneg %p52
        $region50: #{tpu_custom_call.1} parent=47 // pred_check_branch
          %419 = sbr.rel (%p417) target = $region52
        $region51: #{tpu_custom_call.1} parent=47 // pred_region
          %s420 = sand.u32 %s42, 1
          %s421 = scalar_lea.sflag [#allocation4], %s420
          %s422 = sand.u32 %s42, 1
          %s423 = smul.addr %s422, 8
          %s424 = scalar_lea.vmem [#allocation3], %s423
          %426 = vsyncadd %s421, 0
          %s427 = smul.addr %s32, 8
          %s428 = scalar_lea.hbm %s0, %s427
          %s430 = sshll.u32 %s428, 4
          %s431 = int_to_ptr.hbm [resolvable:$true] %s430
          %s432 = sshll.u32 %s424, 4
          %s433 = int_to_ptr.vmem [resolvable:$true] %s432
          %435 = dma.hbm_to_vmem [thread:$0]  %s431, 128, %s433, %s421
        $region52: #{tpu_custom_call.1} parent=47 // pred_fallthru
          _
        // Predicated region
        $region53: #{tpu_custom_call.1} parent=47 // pred_check
          %p436 = pneg %p78
        $region54: #{tpu_custom_call.1} parent=47 // pred_check_branch
          %438 = sbr.rel (%p436) target = $region56
        $region55: #{tpu_custom_call.1} parent=47 // pred_region
          %s439 = sand.u32 %s32, 1
          %s440 = scalar_lea.sflag [#allocation7], %s439
          %s441 = sand.u32 %s68, 1
          %s442 = smul.addr %s441, 8
          %s443 = scalar_lea.vmem [#allocation6], %s442
          %445 = vsyncadd %s440, 0
          %s446 = smul.addr %s32, 8
          %s447 = scalar_lea.hbm %s1, %s446
          %s449 = sshll.u32 %s447, 4
          %s450 = int_to_ptr.hbm [resolvable:$true] %s449
          %s451 = sshll.u32 %s443, 4
          %s452 = int_to_ptr.vmem [resolvable:$true] %s451
          %454 = dma.hbm_to_vmem [thread:$0]  %s450, 128, %s452, %s440
        $region56: #{tpu_custom_call.1} parent=47 // pred_fallthru
          _
        // Predicated region
        $region57: #{tpu_custom_call.1} parent=47 // pred_check
          %p455 = pneg %p104
        $region58: #{tpu_custom_call.1} parent=47 // pred_check_branch
          %457 = sbr.rel (%p455) target = $region60
        $region59: #{tpu_custom_call.1} parent=47 // pred_region
          %s458 = sand.u32 %s32, 1
          %s459 = scalar_lea.sflag [#allocation7], %s458
          %s460 = sand.u32 %s94, 1
          %s461 = smul.addr %s460, 8
          %s462 = scalar_lea.vmem [#allocation8], %s461
          %464 = vsyncadd %s459, 0
          %s465 = smul.addr %s32, 8
          %s466 = scalar_lea.hbm %s2, %s465
          %s468 = sshll.u32 %s466, 4
          %s469 = int_to_ptr.hbm [resolvable:$true] %s468
          %s470 = sshll.u32 %s462, 4
          %s471 = int_to_ptr.vmem [resolvable:$true] %s470
          %473 = dma.hbm_to_vmem [thread:$0]  %s469, 128, %s471, %s459
        $region60: #{tpu_custom_call.1} parent=47 // pred_fallthru
          _
        // Predicated region
        $region61: #{tpu_custom_call.1} parent=47 // pred_check
          %p474 = pneg %p130
        $region62: #{tpu_custom_call.1} parent=47 // pred_check_branch
          %476 = sbr.rel (%p474) target = $region64
        $region63: #{tpu_custom_call.1} parent=47 // pred_region
          %s477 = sand.u32 %s32, 1
          %s478 = scalar_lea.sflag [#allocation10], %s477
          %s479 = sand.u32 %s120, 1
          %s480 = smul.addr %s479, 8
          %s481 = scalar_lea.vmem [#allocation9], %s480
          %483 = vsyncadd %s478, 0
          %s484 = smul.addr %s32, 8
          %s485 = scalar_lea.hbm %s3, %s484
          %s487 = sshll.u32 %s485, 4
          %s488 = int_to_ptr.hbm [resolvable:$true] %s487
          %s489 = sshll.u32 %s481, 4
          %s490 = int_to_ptr.vmem [resolvable:$true] %s489
          %492 = dma.hbm_to_vmem [thread:$0]  %s488, 128, %s490, %s478
        $region64: #{tpu_custom_call.1} parent=47 // pred_fallthru
          _
      $region48: #{tpu_custom_call.1} parent=5 // pred_fallthru
        _
      %p493 = scmp.le.s32.totalorder 1, %s32
      %p494 = scmp.lt.s32.totalorder %s32, 3
      %p495 = pnand %p493, %p494
      %p496 = pneg %p495
      // Predicated region
      $region65: #{tpu_custom_call.1} parent=5 // pred_check
        _
      $region66: #{tpu_custom_call.1} parent=5 // pred_check_branch
        %498 = sbr.rel (%p495) target = $region68
      $region67: #{tpu_custom_call.1} parent=5 // pred_region
        %s499 = ssub.s32 %s32, 1
        %s500 = sand.u32 %s45, 1
        %s501 = scalar_lea.sflag [#allocation4], %s500
        %s502 = sand.u32 %s45, 1
        %s503 = smul.addr %s502, 8
        %s504 = scalar_lea.vmem [#allocation3], %s503
        // Predicated region
        $region69: #{tpu_custom_call.1} parent=67 // pred_check
          %p505 = pneg %p58
        $region70: #{tpu_custom_call.1} parent=67 // pred_check_branch
          %507 = sbr.rel (%p505) target = $region72
        $region71: #{tpu_custom_call.1} parent=67 // pred_region
          %509 = dma.done %s501, 128
        $region72: #{tpu_custom_call.1} parent=67 // pred_fallthru
          _
        %s510 = sand.u32 %s37, 1
        %s511 = scalar_lea.sflag [#allocation7], %s510
        %s512 = sand.u32 %s71, 1
        %s513 = smul.addr %s512, 8
        %s514 = scalar_lea.vmem [#allocation6], %s513
        // Predicated region
        $region73: #{tpu_custom_call.1} parent=67 // pred_check
          %p515 = pneg %p84
        $region74: #{tpu_custom_call.1} parent=67 // pred_check_branch
          %517 = sbr.rel (%p515) target = $region76
        $region75: #{tpu_custom_call.1} parent=67 // pred_region
          %519 = dma.done %s511, 128
        $region76: #{tpu_custom_call.1} parent=67 // pred_fallthru
          _
        %s520 = sand.u32 %s37, 1
        %s521 = scalar_lea.sflag [#allocation7], %s520
        %s522 = sand.u32 %s97, 1
        %s523 = smul.addr %s522, 8
        %s524 = scalar_lea.vmem [#allocation8], %s523
        // Predicated region
        $region77: #{tpu_custom_call.1} parent=67 // pred_check
          %p525 = pneg %p110
        $region78: #{tpu_custom_call.1} parent=67 // pred_check_branch
          %527 = sbr.rel (%p525) target = $region80
        $region79: #{tpu_custom_call.1} parent=67 // pred_region
          %529 = dma.done %s521, 128
        $region80: #{tpu_custom_call.1} parent=67 // pred_fallthru
          _
        %s530 = sand.u32 %s37, 1
        %s531 = scalar_lea.sflag [#allocation10], %s530
        %s532 = sand.u32 %s123, 1
        %s533 = smul.addr %s532, 8
        %s534 = scalar_lea.vmem [#allocation9], %s533
        // Predicated region
        $region81: #{tpu_custom_call.1} parent=67 // pred_check
          %p535 = pneg %p136
        $region82: #{tpu_custom_call.1} parent=67 // pred_check_branch
          %537 = sbr.rel (%p535) target = $region84
        $region83: #{tpu_custom_call.1} parent=67 // pred_region
          %539 = dma.done %s531, 128
        $region84: #{tpu_custom_call.1} parent=67 // pred_fallthru
          _
        // Predicated region
        $region85: #{tpu_custom_call.1} parent=67 // pred_check
          %p540 = pneg %p157
        $region86: #{tpu_custom_call.1} parent=67 // pred_check_branch
          %542 = sbr.rel (%p540) target = $region88
        $region87: #{tpu_custom_call.1} parent=67 // pred_region
          %544 = dma.done [#allocation10], 256
        $region88: #{tpu_custom_call.1} parent=67 // pred_fallthru
          _
        // Predicated region
        $region89: #{tpu_custom_call.1} parent=67 // pred_check
          %p545 = pneg %p199
        $region90: #{tpu_custom_call.1} parent=67 // pred_check_branch
          %547 = sbr.rel (%p545) target = $region92
        $region91: #{tpu_custom_call.1} parent=67 // pred_region
          %549 = dma.done [#allocation13], 256
        $region92: #{tpu_custom_call.1} parent=67 // pred_fallthru
          _
        // Predicated region
        $region93: #{tpu_custom_call.1} parent=67 // pred_check
          %p550 = pneg %p241
        $region94: #{tpu_custom_call.1} parent=67 // pred_check_branch
          %552 = sbr.rel (%p550) target = $region96
        $region95: #{tpu_custom_call.1} parent=67 // pred_region
          %554 = dma.done [#allocation13], 256
        $region96: #{tpu_custom_call.1} parent=67 // pred_fallthru
          _
        // Predicated region
        $region97: #{tpu_custom_call.1} parent=67 // pred_check
          %p555 = pneg %p283
        $region98: #{tpu_custom_call.1} parent=67 // pred_check_branch
          %557 = sbr.rel (%p555) target = $region100
        $region99: #{tpu_custom_call.1} parent=67 // pred_region
          %559 = dma.done [#allocation16], 256
        $region100: #{tpu_custom_call.1} parent=67 // pred_fallthru
          _
        %s560 = sand.u32 %s45, 1
        %s561 = scalar_lea.sflag [#allocation4], %s560
        %s562 = sand.u32 %s45, 1
        %s563 = smul.addr %s562, 8
        %s564 = scalar_lea.vmem [#allocation3], %s563
        %p565 = pneg %p58
        %p566 = pneg %p55
        %s567 = sand.u32 %s37, 1
        %s568 = scalar_lea.sflag [#allocation7], %s567
        %s569 = sand.u32 %s71, 1
        %s570 = smul.addr %s569, 8
        %s571 = scalar_lea.vmem [#allocation6], %s570
        %p572 = pneg %p84
        %p573 = pneg %p81
        %s574 = sand.u32 %s37, 1
        %s575 = scalar_lea.sflag [#allocation7], %s574
        %s576 = sand.u32 %s97, 1
        %s577 = smul.addr %s576, 8
        %s578 = scalar_lea.vmem [#allocation8], %s577
        %p579 = pneg %p110
        %p580 = pneg %p107
        %s581 = sand.u32 %s37, 1
        %s582 = scalar_lea.sflag [#allocation10], %s581
        %s583 = sand.u32 %s123, 1
        %s584 = smul.addr %s583, 8
        %s585 = scalar_lea.vmem [#allocation9], %s584
        %p586 = pneg %p136
        %p587 = pneg %p133
        %p588 = pneg %p157
        %p589 = pneg %p154
        %p590 = pneg %p178
        %p591 = pneg %p175
        %p592 = pneg %p199
        %p593 = pneg %p196
        %p594 = pneg %p220
        %p595 = pneg %p217
        %p596 = pneg %p241
        %p597 = pneg %p238
        %p598 = pneg %p262
        %p599 = pneg %p259
        %p600 = pneg %p283
        %p601 = pneg %p280
        %p602 = pneg %p304
        %p603 = pneg %p301
        %p604 = pneg %p330
        %p605 = pneg %p327
        %s606 = sand.u32 %s317, 1
        %s607 = scalar_lea.sflag [#allocation5], %s606
        %s608 = sand.u32 %s317, 1
        %s609 = smul.addr %s608, 8
        %s610 = scalar_lea.vmem [#allocation17], %s609
        %v612 = vld [vmem:[%s504] sm:$0xff]
        %v613 = vpack.c.bf16 %v612, %v612
        %v614 = vld [vmem:[%s514] sm:$0xff]
        %v615 = vpack.c.bf16 %v614, %v614
        %v616 = vld [vmem:[%s524] sm:$0xff]
        %v617 = vpack.c.bf16 %v616, %v616
        %v618 = vld [vmem:[#allocation11] sm:$0xf]
        %v619 = vld [vmem:[#allocation11 + $0x4] sm:$0xf]
        %v620 = vld [vmem:[#allocation11 + $0x8] sm:$0xf]
        %v621 = vld [vmem:[#allocation11 + $0xc] sm:$0xf]
        %v622 = vld [vmem:[%s5] sm:$0x1]
        %v624 = vperm.slane %v622, 0
        %v630 = vunpack.c.l.b16 %v618
        %v631 = vunpack.c.l.b16 %v619
        %v632 = vunpack.c.l.b16 %v620
        %v633 = vunpack.c.l.b16 %v621
        %v634 = vpack.c.b16 %v631, %v630
        %v635 = vpack.c.b16 %v633, %v632
        %vm636 = vcmask 261120
        %v638 = vsel %vm636, %v613, 0
        %v641 = vsel %vm636, %v634, 0
        %v644 = vsel %vm636, %v635, 0
        %646 = vmatpush.bf16.xpose.msra.mxu0 0
        %647 = vmatpush.bf16.xpose.msra.mxu0 0
        %648 = vmatpush.bf16.xpose.msra.mxu0 0
        %649 = vmatpush.bf16.xpose.msra.mxu0 0
        %650 = vmatpush.bf16.xpose.msra.mxu0 0
        %651 = vmatpush.bf16.xpose.msra.mxu0 0
        %652 = vmatpush.bf16.xpose.msra.mxu0 %v644
        %653 = vmatpush.bf16.xpose.msra.mxu0 %v641
        %654 = vmatmul.bf16.gmra.mxu0 %v638
        %v655 = vpop.f32.mrf.mxu0
        %v656 = vadd.f32 %v624, %v655
        %v657 = vpop.f32.mrf.mxu0
        %658 = vdwg.mxu0
        %v659 = vld [vmem:[#allocation12] sm:$0xf]
        %v660 = vld [vmem:[#allocation12 + $0x4] sm:$0xf]
        %v661 = vld [vmem:[#allocation12 + $0x8] sm:$0xf]
        %v662 = vld [vmem:[#allocation12 + $0xc] sm:$0xf]
        %v663 = vld [vmem:[%s7] sm:$0x1]
        %v665 = vperm.slane %v663, 0
        %v671 = vunpack.c.l.b16 %v659
        %v672 = vunpack.c.l.b16 %v660
        %v673 = vunpack.c.l.b16 %v661
        %v674 = vunpack.c.l.b16 %v662
        %v675 = vpack.c.b16 %v672, %v671
        %v676 = vpack.c.b16 %v674, %v673
        %v678 = vsel %vm636, %v615, 0
        %v681 = vsel %vm636, %v675, 0
        %v684 = vsel %vm636, %v676, 0
        %686 = vmatpush.bf16.xpose.msra.mxu0 0
        %687 = vmatpush.bf16.xpose.msra.mxu0 0
        %688 = vmatpush.bf16.xpose.msra.mxu0 0
        %689 = vmatpush.bf16.xpose.msra.mxu0 0
        %690 = vmatpush.bf16.xpose.msra.mxu0 0
        %691 = vmatpush.bf16.xpose.msra.mxu0 0
        %692 = vmatpush.bf16.xpose.msra.mxu0 %v684
        %693 = vmatpush.bf16.xpose.msra.mxu0 %v681
        %694 = vmatmul.bf16.gmra.mxu0 %v678
        %v695 = vpop.f32.mrf.mxu0
        %v696 = vadd.f32 %v665, %v695
        %v697 = vpop.f32.mrf.mxu0
        %698 = vdwg.mxu0
        %v699 = vld [vmem:[#allocation14] sm:$0xf]
        %v700 = vld [vmem:[#allocation14 + $0x4] sm:$0xf]
        %v701 = vld [vmem:[#allocation14 + $0x8] sm:$0xf]
        %v702 = vld [vmem:[#allocation14 + $0xc] sm:$0xf]
        %v703 = vld [vmem:[%s9] sm:$0x1]
        %v705 = vperm.slane %v703, 0
        %v711 = vunpack.c.l.b16 %v699
        %v712 = vunpack.c.l.b16 %v700
        %v713 = vunpack.c.l.b16 %v701
        %v714 = vunpack.c.l.b16 %v702
        %v715 = vpack.c.b16 %v712, %v711
        %v716 = vpack.c.b16 %v714, %v713
        %v718 = vsel %vm636, %v617, 0
        %v721 = vsel %vm636, %v715, 0
        %v724 = vsel %vm636, %v716, 0
        %726 = vmatpush.bf16.xpose.msra.mxu0 0
        %727 = vmatpush.bf16.xpose.msra.mxu0 0
        %728 = vmatpush.bf16.xpose.msra.mxu0 0
        %729 = vmatpush.bf16.xpose.msra.mxu0 0
        %730 = vmatpush.bf16.xpose.msra.mxu0 0
        %731 = vmatpush.bf16.xpose.msra.mxu0 0
        %732 = vmatpush.bf16.xpose.msra.mxu0 %v724
        %733 = vmatpush.bf16.xpose.msra.mxu0 %v721
        %734 = vmatmul.bf16.gmra.mxu0 %v718
        %v735 = vpop.f32.mrf.mxu0
        %v736 = vadd.f32 %v705, %v735
        %v737 = vpop.f32.mrf.mxu0
        %738 = vdwg.mxu0
        %v739 = vpack.c.bf16 %v656, %v656
        %v740 = vpack.c.bf16 %v696, %v696
        %v741 = vpack.c.bf16 %v736, %v736
        %v742 = vld [vmem:[%s534] sm:$0xff]
        %vm743 = vcmp.eq.f32.partialorder %v742, 0.0
        %v744 = vsel %vm743, -1e+09, 0.0
        %vm745 = vcmask 64512
        %v747 = vsel %vm745, %v739, 0
        %v750 = vsel %vm745, %v740, 0
        %752 = vmatpush.bf16.xpose.msra.mxu0 0
        %753 = vmatpush.bf16.xpose.msra.mxu0 0
        %754 = vmatpush.bf16.xpose.msra.mxu0 0
        %755 = vmatpush.bf16.xpose.msra.mxu0 0
        %756 = vmatpush.bf16.xpose.msra.mxu0 0
        %757 = vmatpush.bf16.xpose.msra.mxu0 0
        %758 = vmatpush.bf16.xpose.msra.mxu0 0
        %759 = vmatpush.bf16.xpose.msra.mxu0 %v750
        %760 = vmatmul.bf16.gmra.mxu0 %v747
        %v761 = vpop.f32.mrf.mxu0
        %v762 = vadd.f32 0.0, %v761
        %v763 = vpop.f32.mrf.mxu0
        %764 = vdwg.mxu0
        %v765 = vmul.f32 %v762, 0.35355338
        %v766 = vadd.f32 %v765, %v744
        %v767 = vsel %vm745, %v766, -inf
        %768 = vmax.xlane.f32.xlu0 %v767
        %v769 = vpop.xlane.xlu0 %768
        %v770 = vsub.f32 %v766, %v769
        %v771 = vmul.f32 %v770, 1.442695
        %v772 = vpow.pop %v771
        %v773 = vsel %vm745, %v772, 0.0
        %774 = vadd.xlane.f32.xlu0 %v773
        %v775 = vpop.xlane.xlu0 %774
        %v776 = vrcp.pop %v775
        %v777 = vmul.f32 %v772, %v776
        %v778 = vpack.c.bf16 %v777, %v777
        %v780 = vsel %vm745, %v778, 0
        %vm782 = vcmask 1043456
        %v784 = vsel %vm782, %v741, 0
        %786 = vmatpush.bf16.msra.mxu0 0
        %787 = vmatpush.bf16.msra.mxu0 0
        %788 = vmatpush.bf16.msra.mxu0 0
        %789 = vmatpush.bf16.msra.mxu0 0
        %790 = vmatpush.bf16.msra.mxu0 0
        %791 = vmatpush.bf16.msra.mxu0 0
        %792 = vmatpush.bf16.msra.mxu0 0
        %793 = vmatpush.bf16.msra.mxu0 %v784
        %794 = vmatmul.bf16.gmra.mxu0 %v780
        %v795 = vpop.f32.mrf.mxu0
        %v796 = vadd.f32 0.0, %v795
        %v797 = vpop.f32.mrf.mxu0
        %798 = vdwg.mxu0
        %799 = vst.msk [vmem:[#allocation2] sm:$0xff] %vm745, %v796
        %v801 = vunpack.c.l.b16 %v739
        %v802 = vpack.c.b16 %v801, %v801
        %803 = vrot.lane.b32.xlu0 %v802, 120
        %v804 = vpop.permute.xlu0 %803
        %v806 = vunpack.c.l.b16 %v740
        %v807 = vpack.c.b16 %v806, %v806
        %808 = vrot.lane.b32.xlu0 %v807, 120
        %v809 = vpop.permute.xlu0 %808
        %v811 = vsel %vm745, %v804, 0
        %v814 = vsel %vm745, %v809, 0
        %816 = vmatpush.bf16.xpose.msra.mxu0 0
        %817 = vmatpush.bf16.xpose.msra.mxu0 0
        %818 = vmatpush.bf16.xpose.msra.mxu0 0
        %819 = vmatpush.bf16.xpose.msra.mxu0 0
        %820 = vmatpush.bf16.xpose.msra.mxu0 0
        %821 = vmatpush.bf16.xpose.msra.mxu0 0
        %822 = vmatpush.bf16.xpose.msra.mxu0 0
        %823 = vmatpush.bf16.xpose.msra.mxu0 %v814
        %824 = vmatmul.bf16.gmra.mxu0 %v811
        %v825 = vpop.f32.mrf.mxu0
        %v826 = vadd.f32 0.0, %v825
        %v827 = vpop.f32.mrf.mxu0
        %828 = vdwg.mxu0
        %v829 = vmul.f32 %v826, 0.35355338
        %v830 = vadd.f32 %v829, %v744
        %v831 = vsel %vm745, %v830, -inf
        %832 = vmax.xlane.f32.xlu0 %v831
        %v833 = vpop.xlane.xlu0 %832
        %v834 = vsub.f32 %v830, %v833
        %v835 = vmul.f32 %v834, 1.442695
        %v836 = vpow.pop %v835
        %v837 = vsel %vm745, %v836, 0.0
        %838 = vadd.xlane.f32.xlu0 %v837
        %v839 = vpop.xlane.xlu0 %838
        %v840 = vrcp.pop %v839
        %v841 = vmul.f32 %v836, %v840
        %v842 = vpack.c.bf16 %v841, %v841
        %v844 = vunpack.c.l.b16 %v741
        %v845 = vpack.c.b16 %v844, %v844
        %846 = vrot.lane.b32.xlu0 %v845, 120
        %v847 = vpop.permute.xlu0 %846
        %v849 = vsel %vm745, %v842, 0
        %v852 = vsel %vm782, %v847, 0
        %854 = vmatpush.bf16.msra.mxu0 0
        %855 = vmatpush.bf16.msra.mxu0 0
        %856 = vmatpush.bf16.msra.mxu0 0
        %857 = vmatpush.bf16.msra.mxu0 0
        %858 = vmatpush.bf16.msra.mxu0 0
        %859 = vmatpush.bf16.msra.mxu0 0
        %860 = vmatpush.bf16.msra.mxu0 0
        %861 = vmatpush.bf16.msra.mxu0 %v852
        %862 = vmatmul.bf16.gmra.mxu0 %v849
        %v863 = vpop.f32.mrf.mxu0
        %v864 = vadd.f32 0.0, %v863
        %v865 = vpop.f32.mrf.mxu0
        %866 = vdwg.mxu0
        %868 = vrot.lane.b32.xlu0 %v864, 8
        %v869 = vpop.permute.xlu0 %868
        %vm871 = vcmask 130112
        %872 = vst.msk [vmem:[#allocation2] sm:$0xff] %vm871, %v869
        %873 = vrot.lane.b32.xlu0 %v802, 112
        %v874 = vpop.permute.xlu0 %873
        %875 = vrot.lane.b32.xlu0 %v807, 112
        %v876 = vpop.permute.xlu0 %875
        %v878 = vsel %vm745, %v874, 0
        %v881 = vsel %vm745, %v876, 0
        %883 = vmatpush.bf16.xpose.msra.mxu0 0
        %884 = vmatpush.bf16.xpose.msra.mxu0 0
        %885 = vmatpush.bf16.xpose.msra.mxu0 0
        %886 = vmatpush.bf16.xpose.msra.mxu0 0
        %887 = vmatpush.bf16.xpose.msra.mxu0 0
        %888 = vmatpush.bf16.xpose.msra.mxu0 0
        %889 = vmatpush.bf16.xpose.msra.mxu0 0
        %890 = vmatpush.bf16.xpose.msra.mxu0 %v881
        %891 = vmatmul.bf16.gmra.mxu0 %v878
        %v892 = vpop.f32.mrf.mxu0
        %v893 = vadd.f32 0.0, %v892
        %v894 = vpop.f32.mrf.mxu0
        %895 = vdwg.mxu0
        %v896 = vmul.f32 %v893, 0.35355338
        %v897 = vadd.f32 %v896, %v744
        %v898 = vsel %vm745, %v897, -inf
        %899 = vmax.xlane.f32.xlu0 %v898
        %v900 = vpop.xlane.xlu0 %899
        %v901 = vsub.f32 %v897, %v900
        %v902 = vmul.f32 %v901, 1.442695
        %v903 = vpow.pop %v902
        %v904 = vsel %vm745, %v903, 0.0
        %905 = vadd.xlane.f32.xlu0 %v904
        %v906 = vpop.xlane.xlu0 %905
        %v907 = vrcp.pop %v906
        %v908 = vmul.f32 %v903, %v907
        %v909 = vpack.c.bf16 %v908, %v908
        %910 = vrot.lane.b32.xlu0 %v845, 112
        %v911 = vpop.permute.xlu0 %910
        %v913 = vsel %vm745, %v909, 0
        %v916 = vsel %vm782, %v911, 0
        %918 = vmatpush.bf16.msra.mxu0 0
        %919 = vmatpush.bf16.msra.mxu0 0
        %920 = vmatpush.bf16.msra.mxu0 0
        %921 = vmatpush.bf16.msra.mxu0 0
        %922 = vmatpush.bf16.msra.mxu0 0
        %923 = vmatpush.bf16.msra.mxu0 0
        %924 = vmatpush.bf16.msra.mxu0 0
        %925 = vmatpush.bf16.msra.mxu0 %v916
        %926 = vmatmul.bf16.gmra.mxu0 %v913
        %v927 = vpop.f32.mrf.mxu0
        %v928 = vadd.f32 0.0, %v927
        %v929 = vpop.f32.mrf.mxu0
        %930 = vdwg.mxu0
        %932 = vrot.lane.b32.xlu0 %v928, 16
        %v933 = vpop.permute.xlu0 %932
        %vm935 = vcmask 195712
        %936 = vst.msk [vmem:[#allocation2] sm:$0xff] %vm935, %v933
        %937 = vrot.lane.b32.xlu0 %v802, 104
        %v938 = vpop.permute.xlu0 %937
        %939 = vrot.lane.b32.xlu0 %v807, 104
        %v940 = vpop.permute.xlu0 %939
        %v942 = vsel %vm745, %v938, 0
        %v945 = vsel %vm745, %v940, 0
        %947 = vmatpush.bf16.xpose.msra.mxu0 0
        %948 = vmatpush.bf16.xpose.msra.mxu0 0
        %949 = vmatpush.bf16.xpose.msra.mxu0 0
        %950 = vmatpush.bf16.xpose.msra.mxu0 0
        %951 = vmatpush.bf16.xpose.msra.mxu0 0
        %952 = vmatpush.bf16.xpose.msra.mxu0 0
        %953 = vmatpush.bf16.xpose.msra.mxu0 0
        %954 = vmatpush.bf16.xpose.msra.mxu0 %v945
        %955 = vmatmul.bf16.gmra.mxu0 %v942
        %v956 = vpop.f32.mrf.mxu0
        %v957 = vadd.f32 0.0, %v956
        %v958 = vpop.f32.mrf.mxu0
        %959 = vdwg.mxu0
        %v960 = vmul.f32 %v957, 0.35355338
        %v961 = vadd.f32 %v960, %v744
        %v962 = vsel %vm745, %v961, -inf
        %963 = vmax.xlane.f32.xlu0 %v962
        %v964 = vpop.xlane.xlu0 %963
        %v965 = vsub.f32 %v961, %v964
        %v966 = vmul.f32 %v965, 1.442695
        %v967 = vpow.pop %v966
        %v968 = vsel %vm745, %v967, 0.0
        %969 = vadd.xlane.f32.xlu0 %v968
        %v970 = vpop.xlane.xlu0 %969
        %v971 = vrcp.pop %v970
        %v972 = vmul.f32 %v967, %v971
        %v973 = vpack.c.bf16 %v972, %v972
        %974 = vrot.lane.b32.xlu0 %v845, 104
        %v975 = vpop.permute.xlu0 %974
        %v977 = vsel %vm745, %v973, 0
        %v980 = vsel %vm782, %v975, 0
        %982 = vmatpush.bf16.msra.mxu0 0
        %983 = vmatpush.bf16.msra.mxu0 0
        %984 = vmatpush.bf16.msra.mxu0 0
        %985 = vmatpush.bf16.msra.mxu0 0
        %986 = vmatpush.bf16.msra.mxu0 0
        %987 = vmatpush.bf16.msra.mxu0 0
        %988 = vmatpush.bf16.msra.mxu0 0
        %989 = vmatpush.bf16.msra.mxu0 %v980
        %990 = vmatmul.bf16.gmra.mxu0 %v977
        %v991 = vpop.f32.mrf.mxu0
        %v992 = vadd.f32 0.0, %v991
        %v993 = vpop.f32.mrf.mxu0
        %994 = vdwg.mxu0
        %996 = vrot.lane.b32.xlu0 %v992, 24
        %v997 = vpop.permute.xlu0 %996
        %vm999 = vcmask 261312
        %1000 = vst.msk [vmem:[#allocation2] sm:$0xff] %vm999, %v997
        %v1001 = vld [vmem:[#allocation2] sm:$0xff]
        %v1002 = vpack.c.bf16 %v1001, %v1001
        %v1003 = vld [vmem:[#allocation15] sm:$0xf]
        %v1004 = vld [vmem:[#allocation15 + $0x4] sm:$0xf]
        %v1005 = vld [vmem:[#allocation15 + $0x8] sm:$0xf]
        %v1006 = vld [vmem:[#allocation15 + $0xc] sm:$0xf]
        %v1007 = vld [vmem:[%s11] sm:$0x1]
        %v1009 = vperm.slane %v1007, 0
        %v1015 = vunpack.c.l.b16 %v1003
        %v1016 = vunpack.c.l.b16 %v1004
        %v1017 = vunpack.c.l.b16 %v1005
        %v1018 = vunpack.c.l.b16 %v1006
        %v1019 = vpack.c.b16 %v1016, %v1015
        %v1020 = vpack.c.b16 %v1018, %v1017
        %v1022 = vsel %vm636, %v1002, 0
        %v1025 = vsel %vm636, %v1019, 0
        %v1028 = vsel %vm636, %v1020, 0
        %1030 = vmatpush.bf16.xpose.msra.mxu0 0
        %1031 = vmatpush.bf16.xpose.msra.mxu0 0
        %1032 = vmatpush.bf16.xpose.msra.mxu0 0
        %1033 = vmatpush.bf16.xpose.msra.mxu0 0
        %1034 = vmatpush.bf16.xpose.msra.mxu0 0
        %1035 = vmatpush.bf16.xpose.msra.mxu0 0
        %1036 = vmatpush.bf16.xpose.msra.mxu0 %v1028
        %1037 = vmatpush.bf16.xpose.msra.mxu0 %v1025
        %1038 = vmatmul.bf16.gmra.mxu0 %v1022
        %v1039 = vpop.f32.mrf.mxu0
        %v1040 = vadd.f32 %v1009, %v1039
        %v1041 = vpop.f32.mrf.mxu0
        %1042 = vdwg.mxu0
        %1043 = vst.msk [vmem:[%s610] sm:$0xff] %vm636, %v1040
        %s1044 = sand.u32 %s317, 1
        %s1045 = scalar_lea.sflag [#allocation5], %s1044
        %s1046 = sand.u32 %s317, 1
        %s1047 = smul.addr %s1046, 8
        %s1048 = scalar_lea.vmem [#allocation17], %s1047
        // Predicated region
        $region101: #{tpu_custom_call.1} parent=67 // pred_check
          %p1049 = pneg %p327
        $region102: #{tpu_custom_call.1} parent=67 // pred_check_branch
          %1051 = sbr.rel (%p1049) target = $region104
        $region103: #{tpu_custom_call.1} parent=67 // pred_region
          %1053 = vsyncadd %s1045, 0
          %s1054 = smul.addr %s37, 8
          %s1055 = scalar_lea.hbm %s12, %s1054
          %s1057 = sshll.u32 %s1048, 4
          %s1058 = int_to_ptr.vmem [resolvable:$true] %s1057
          %s1059 = sshll.u32 %s1055, 4
          %s1060 = int_to_ptr.hbm [resolvable:$true] %s1059
          %1062 = dma.vmem_to_hbm [thread:$0]  %s1058, 128, %s1060, %s1045
        $region104: #{tpu_custom_call.1} parent=67 // pred_fallthru
          _
      $region68: #{tpu_custom_call.1} parent=5 // pred_fallthru
        _
      %p1063 = scmp.le.s32.totalorder 2, %s32
      // Predicated region
      $region105: #{tpu_custom_call.1} parent=5 // pred_check
        %p1064 = pneg %p1063
      $region106: #{tpu_custom_call.1} parent=5 // pred_check_branch
        %1066 = sbr.rel (%p1064) target = $region108
      $region107: #{tpu_custom_call.1} parent=5 // pred_region
        %s1067 = ssub.s32 %s32, 2
        // Predicated region
        $region109: #{tpu_custom_call.1} parent=107 // pred_check
          %p1068 = pneg %p333
        $region110: #{tpu_custom_call.1} parent=107 // pred_check_branch
          %1070 = sbr.rel (%p1068) target = $region112
        $region111: #{tpu_custom_call.1} parent=107 // pred_region
          %s1071 = sand.u32 %s318, 1
          %s1072 = scalar_lea.sflag [#allocation5], %s1071
          %s1073 = sand.u32 %s318, 1
          %s1074 = smul.addr %s1073, 8
          %s1075 = scalar_lea.vmem [#allocation17], %s1074
          %1077 = dma.done %s1072, 128
        $region112: #{tpu_custom_call.1} parent=107 // pred_fallthru
          _
      $region108: #{tpu_custom_call.1} parent=5 // pred_fallthru
        _
    $region6: #{tpu_custom_call.1} parent=1 // loop_footer
      %s36 = sadd.s32 1, %s32
    $region7: #{tpu_custom_call.1} parent=1 // loop_footer_branch
      %31 = sbr.rel target = $region3
    $region8: #{tpu_custom_call.1} parent=1 // loop_exit
      _
    %1078 = vsyncpa [#allocation4], 1
    %s1079 = scalar_lea.sflag [#allocation4], 1
    %1080 = vsyncpa %s1079, 1
    %1081 = vsyncpa [#allocation7], 1
    %s1082 = scalar_lea.sflag [#allocation7], 1
    %1083 = vsyncpa %s1082, 1
    %1084 = vsyncpa [#allocation10], 1
    %s1085 = scalar_lea.sflag [#allocation10], 1
    %1086 = vsyncpa %s1085, 1
    %1087 = vsyncpa [#allocation13], 1
    %1088 = vsyncpa [#allocation16], 1
    %1089 = vsyncpa [#allocation5], 1
    %s1090 = scalar_lea.sflag [#allocation5], 1
    %1091 = vsyncpa %s1090, 1

</llo_original>
